<compile_context>
chip_gen: v7x
topology: tpu7x:2x2x1
jax: 0.10.0
libtpu: 0.0.40
codegen_flags: <defaults>
</compile_context>

<pallas_src>
import functools
from math import pi as PI

import jax
import jax.numpy as jnp
from jax.experimental import pallas as pl
from jax.experimental.pallas import tpu as pltpu

NUM_SHARDS = 2      # leading "parallel" grid axis: both TensorCores on v7x
MAX_TILE_E = 512    # multiple of 128 so a tiled [1, tile_e] index row stays legal


def _round_up(x, m):
    return (x + m - 1) // m * m


@functools.lru_cache(maxsize=None)
def _vmem_limit_bytes():
    # Generation-aware scoped-VMEM budget: ~3/4 of physical, capped at 96 MiB.
    # v5e/v6e (128 MiB physical) -> 96 MiB; v7x (64 MiB physical) -> 48 MiB.
    try:
        cap = getattr(pltpu.get_tpu_info(), "vmem_capacity_bytes", None)
        if cap:
            return int(min(cap * 3 // 4, 96 * 1024 * 1024))
    except Exception:
        pass
    return 32 * 1024 * 1024


def _mask_bf16(cond):
    # bool -> f32 -> bf16 keeps the cast on known-good Mosaic lowering paths.
    return cond.astype(jnp.float32).astype(jnp.bfloat16)


# ----------------------------------------------------------------------------
# Kernels
# ----------------------------------------------------------------------------

def _mlp2_kernel(x_ref, w1_ref, b1_ref, w2_ref, b2_ref, o_ref):
    # o = relu(x @ w1 + b1) @ w2 + b2   (bf16 MXU operands, f32 accumulation,
    # f32 bias/ReLU on the VPU -> v5e safe).
    xb = x_ref[...].astype(jnp.bfloat16)
    h = jnp.dot(xb, w1_ref[...], preferred_element_type=jnp.float32)
    h = jnp.maximum(h + b1_ref[...], 0.0)
    o_ref[...] = jnp.dot(h.astype(jnp.bfloat16), w2_ref[...],
                         preferred_element_type=jnp.float32) + b2_ref[...]


def _interaction_kernel(vals_ref, idx_ref, idxt_ref, xbf_ref,
                        sel_ref, off_ref, coeff_ref,
                        wg1_ref, bg1_ref, wg2_ref, bg2_ref,
                        w1_ref, b1_ref, w2_ref, b2_ref, w3_ref, b3_ref,
                        o_ref):
    """One SPNN interaction block, fully fused, per edge tile.

    grid = (shard, edge_tile).  o_ref is the per-shard resident [N_pad, H]
    accumulator (zero-initialised at the first edge tile of each shard); the
    residual add and shard sum happen in f32 JAX glue outside.
    Padded edges carry sentinel index N_pad, so their one-hot rows/columns are
    all zero and their (nonzero) edge_out never reaches the scatter.
    """
    @pl.when(pl.program_id(1) == 0)
    def _init():
        o_ref[...] = jnp.zeros_like(o_ref)

    tile_e = vals_ref.shape[0]
    n_pad, H = xbf_ref.shape

    # --- fused Gaussian smearing: tiny K=6 sel-matmul (f32) + EUP exp --------
    v = jnp.dot(vals_ref[...], sel_ref[...],
                preferred_element_type=jnp.float32)            # [T, GTOT_pad]
    diff = v - off_ref[...]
    slab = jnp.exp(coeff_ref[...] * diff * diff)               # f32

    # --- packed geo MLPs: block-diagonal 1st/2nd layers -> two bf16 matmuls --
    gh = jnp.dot(slab.astype(jnp.bfloat16), wg1_ref[...],
                 preferred_element_type=jnp.float32)
    gh = jnp.maximum(gh + bg1_ref[...], 0.0)
    geo = jnp.dot(gh.astype(jnp.bfloat16), wg2_ref[...],
                  preferred_element_type=jnp.float32) + bg2_ref[...]  # [T, 3H]

    # --- node-feature gathers: exact 0/1 bf16 one-hot matmuls ----------------
    # TODO(synk): one-hot gather/scatter is O(E*N_pad*H); beyond N_pad ~1-2K
    # switch to scalar-prefetched indices + DMA row gather and shrink the
    # resident node table (v7x only has 64 MiB VMEM).
    idx = idx_ref[...]                                         # [T, 4] int32
    x_bf = xbf_ref[...]                                        # [N_pad, H] bf16
    iota_en = jax.lax.broadcasted_iota(jnp.int32, (tile_e, n_pad), 1)

    def gather(c):
        oh = _mask_bf16(iota_en == idx[:, c:c + 1])            # [T, N_pad]
        return jnp.dot(oh, x_bf, preferred_element_type=jnp.float32)

    x_i, x_j, x_k, x_p = gather(0), gather(1), gather(2), gather(3)

    # --- combine MLP; single K=7H first-layer dot on the concatenated operand
    cat = jnp.concatenate([x_i, x_j, x_k, x_p, geo],
                          axis=1).astype(jnp.bfloat16)         # [T, 7H]
    h = jnp.dot(cat, w1_ref[...], preferred_element_type=jnp.float32) + b1_ref[...]
    h = jnp.maximum(h, 0.0)
    h = jnp.dot(h.astype(jnp.bfloat16), w2_ref[...],
                preferred_element_type=jnp.float32) + b2_ref[...]
    h = jnp.maximum(h, 0.0)
    edge_out = jnp.dot(h.astype(jnp.bfloat16), w3_ref[...],
                       preferred_element_type=jnp.float32) + b3_ref[...]  # [T, H]

    # --- scatter-add via transposed one-hot (no XLU transpose needed) --------
    iota_ne = jax.lax.broadcasted_iota(jnp.int32, (n_pad, tile_e), 0)
    oh_it = _mask_bf16(iota_ne == idxt_ref[...])               # [N_pad, T]
    o_ref[...] += jnp.dot(oh_it, edge_out.astype(jnp.bfloat16),
                          preferred_element_type=jnp.float32)


# ----------------------------------------------------------------------------
# Wrappers
# ----------------------------------------------------------------------------

def mlp2(x, w1, b1, w2, b2, *, tile_m=256):
    M, Cin = x.shape
    Dout = w2.shape[1]
    tile = min(tile_m, _round_up(M, 8))
    Mp = _round_up(M, tile)
    xp = x if Mp == M else jnp.zeros((Mp, Cin), x.dtype).at[:M].set(x)
    out = pl.pallas_call(
        _mlp2_kernel,
        grid=(Mp // tile,),
        in_specs=[pl.BlockSpec((tile, Cin), lambda m: (m, 0)),
                  pl.BlockSpec(w1.shape, lambda m: (0, 0)),
                  pl.BlockSpec(b1.shape, lambda m: (0, 0)),
                  pl.BlockSpec(w2.shape, lambda m: (0, 0)),
                  pl.BlockSpec(b2.shape, lambda m: (0, 0))],
        out_specs=pl.BlockSpec((tile, Dout), lambda m: (m, 0)),
        out_shape=jax.ShapeDtypeStruct((Mp, Dout), jnp.float32),
        compiler_params=pltpu.CompilerParams(
            dimension_semantics=("parallel",),
            vmem_limit_bytes=_vmem_limit_bytes()),
    )(xp, w1, b1, w2, b2)
    return out[:M]


def interaction(vals3, idx3, idxt3, x_node_bf, consts, blk, tile_e):
    n_shards, E_s, _ = vals3.shape
    N_pad, H = x_node_bf.shape
    GTOTp = consts["sel"].shape[1]
    E_tot = n_shards * E_s

    flops = int(2 * E_tot * (6 * GTOTp + GTOTp * 3 * H + 9 * H * H
                             + 5 * N_pad * H + 7 * H * 4 * H
                             + 4 * H * 2 * H + 2 * H * H))
    bytes_accessed = int(
        4 * E_tot * (6 + 4 + 1)                       # vals + idx + idx_i
        + 2 * N_pad * H                               # bf16 node table
        + 4 * n_shards * N_pad * H                    # per-shard accumulators
        + 4 * 3 * GTOTp                               # sel/off/coeff
        + 2 * (GTOTp * 3 * H + 9 * H * H + 28 * H * H + 8 * H * H + 2 * H * H)
        + 4 * (6 * H + 4 * H + 2 * H + H))

    def resident(arr):
        return pl.BlockSpec(arr.shape, lambda c, e: (0, 0))

    return pl.pallas_call(
        _interaction_kernel,
        grid=(n_shards, E_s // tile_e),
        in_specs=[
            pl.BlockSpec((None, tile_e, 6), lambda c, e: (c, e, 0)),   # raw geo vals
            pl.BlockSpec((None, tile_e, 4), lambda c, e: (c, e, 0)),   # i,j,k,p
            pl.BlockSpec((None, 1, tile_e), lambda c, e: (c, 0, e)),   # i (lane-major)
            resident(x_node_bf),                                       # bf16 node table
            resident(consts["sel"]), resident(consts["off"]),
            resident(consts["coeff"]),
            resident(blk["wg1"]), resident(blk["bg1"]),
            resident(blk["wg2"]), resident(blk["bg2"]),
            resident(blk["w1"]), resident(blk["b1"]),
            resident(blk["w2"]), resident(blk["b2"]),
            resident(blk["w3"]), resident(blk["b3"]),
        ],
        out_specs=pl.BlockSpec((None, N_pad, H), lambda c, e: (c, 0, 0)),
        out_shape=jax.ShapeDtypeStruct((n_shards, N_pad, H), jnp.float32),
        compiler_params=pltpu.CompilerParams(
            dimension_semantics=("parallel", "arbitrary"),
            vmem_limit_bytes=_vmem_limit_bytes()),
        cost_estimate=pl.CostEstimate(flops=flops,
                                      transcendentals=int(E_tot * GTOTp),
                                      bytes_accessed=bytes_accessed),
    )(vals3, idx3, idxt3, x_node_bf,
      consts["sel"], consts["off"], consts["coeff"],
      blk["wg1"], blk["bg1"], blk["wg2"], blk["bg2"],
      blk["w1"], blk["b1"], blk["w2"], blk["b2"], blk["w3"], blk["b3"])


# ----------------------------------------------------------------------------
# Parameter / constant construction (deterministic, synthetic)
# ----------------------------------------------------------------------------

def xavier(key, fan_in, fan_out):
    bound = (6.0 / (fan_in + fan_out)) ** 0.5
    return jax.random.uniform(key, (fan_in, fan_out), jnp.float32, -bound, bound)


def zeros_bias(fan_out):
    return jnp.zeros((1, fan_out), jnp.float32)


def block_diag3(a, b, c):
    ra, ca = a.shape
    rb, cb = b.shape
    rc, cc = c.shape
    out = jnp.zeros((ra + rb + rc, ca + cb + cc), jnp.float32)
    out = out.at[:ra, :ca].set(a)
    out = out.at[ra:ra + rb, ca:ca + cb].set(b)
    out = out.at[ra + rb:, ca + cb:].set(c)
    return out


def make_params(key, input_channels_node, hidden_channels, output_channels,
                num_interactions, num_gaussians):
    H = hidden_channels
    G0, G1, G2 = num_gaussians
    GTOT = 3 * G0 + 2 * G1 + G2
    GTOT_pad = _round_up(GTOT, 128)          # lane-aligned K for the geo MLP
    keys = iter(jax.random.split(key, 16 + 16 * num_interactions))
    bf16 = lambda a: a.astype(jnp.bfloat16)

    params = {"embedding": (bf16(xavier(next(keys), input_channels_node, H)),
                            zeros_bias(H),
                            bf16(xavier(next(keys), H, H)), zeros_bias(H))}

    interactions = []
    for _ in range(num_interactions):
        wa1 = xavier(next(keys), G0, H);            wa2 = xavier(next(keys), H, H)
        wb1 = xavier(next(keys), G0 + G1, H);       wb2 = xavier(next(keys), H, H)
        wc1 = xavier(next(keys), G0 + G1 + G2, H);  wc2 = xavier(next(keys), H, H)
        wg1 = block_diag3(wa1, wb1, wc1)                         # [GTOT, 3H]
        wg1 = jnp.zeros((GTOT_pad, 3 * H), jnp.float32).at[:GTOT].set(wg1)
        blk = {
            "wg1": bf16(wg1),                                    # [GTOT_pad, 3H]
            "bg1": jnp.zeros((1, 3 * H), jnp.float32),
            "wg2": bf16(block_diag3(wa2, wb2, wc2)),             # [3H, 3H]
            "bg2": jnp.zeros((1, 3 * H), jnp.float32),
            "w1": bf16(xavier(next(keys), 7 * H, 4 * H)), "b1": zeros_bias(4 * H),
            "w2": bf16(xavier(next(keys), 4 * H, 2 * H)), "b2": zeros_bias(2 * H),
            "w3": bf16(xavier(next(keys), 2 * H, H)),     "b3": zeros_bias(H),
        }
        interactions.append(blk)
    params["interactions"] = interactions

    params["head"] = (bf16(xavier(next(keys), H, H // 2)), zeros_bias(H // 2),
                      bf16(xavier(next(keys), H // 2, output_channels)),
                      zeros_bias(output_channels))
    return params


def make_geo_consts(cutoff, num_gaussians):
    """Packed smearing constants, slab order: de1 | de2 | te1 | de3 | te2 | pe1.

    Columns are zero-padded up to a multiple of 128; padded columns produce a
    harmless exp(0)=1 that is killed by the zero-padded wg1 rows.
    """
    G0, G1, G2 = num_gaussians
    segs = [(0.0, cutoff, G0), (0.0, cutoff, G0), (0.0, PI, G1),
            (0.0, cutoff, G0), (0.0, PI, G1), (0.0, 2 * PI, G2)]
    GTOT = 3 * G0 + 2 * G1 + G2
    GTOT_pad = _round_up(GTOT, 128)
    sel = jnp.zeros((6, GTOT_pad), jnp.float32)
    off = jnp.zeros((1, GTOT_pad), jnp.float32)
    coeff = jnp.zeros((1, GTOT_pad), jnp.float32)
    col = 0
    for s, (lo, hi, g) in enumerate(segs):
        o = jnp.linspace(lo, hi, g, dtype=jnp.float32)
        delta = (hi - lo) / (g - 1)
        c = -0.5 / (delta ** 2)
        sel = sel.at[s, col:col + g].set(1.0)
        off = off.at[0, col:col + g].set(o)
        coeff = coeff.at[0, col:col + g].set(c)
        col += g
    return {"sel": sel, "off": off, "coeff": coeff}


# ----------------------------------------------------------------------------
# Forward pass
# ----------------------------------------------------------------------------

def get_angle(v1, v2):
    cross = jnp.cross(v1, v2)
    return jnp.arctan2(jnp.linalg.norm(cross, axis=1), jnp.sum(v1 * v2, axis=1))


def gtmp_forward(params, geo_consts, x, pos, edge_index_3rd):
    i, j, k, p = edge_index_3rd
    N = x.shape[0]
    E = i.shape[0]

    # node embedding (fused 2-layer MLP kernel)
    x_emb = mlp2(x, *params["embedding"])                   # [N, H]
    H = x_emb.shape[1]
    N_pad = _round_up(N, 8)
    x_node = jnp.zeros((N_pad, H), jnp.float32).at[:N].set(x_emb)

    # edge tiling: one full tile per shard when small (multiple of 8), else
    # 512-wide tiles (multiple of 128 so the [1, tile_e] index row is legal).
    E_shard = (E + NUM_SHARDS - 1) // NUM_SHARDS
    if E_shard <= MAX_TILE_E:
        tile_e = _round_up(max(E_shard, 1), 8)
        E_s = tile_e
    else:
        tile_e = MAX_TILE_E
        E_s = _round_up(E_shard, tile_e)
    E_pad = NUM_SHARDS * E_s

    # per-edge geometry (tiny [E,3] math, plain JAX glue)
    # TODO(synk): cross/atan2/sign on [E,3] stay in XLA; no clean Pallas win here.
    rel_ij = pos[j] - pos[i]
    rel_kj = pos[k] - pos[j]
    rel_pj = pos[p] - pos[j]
    d1 = jnp.linalg.norm(rel_ij, axis=1)
    d2 = jnp.linalg.norm(rel_kj, axis=1)
    d3 = jnp.linalg.norm(rel_pj, axis=1)
    theta1 = get_angle(rel_ij, rel_kj)
    theta2 = get_angle(rel_ij, rel_pj)
    v1 = jnp.cross(rel_ij, rel_kj)
    v2 = jnp.cross(rel_ij, rel_pj)
    phi = get_angle(v1, v2)
    flag = jnp.sign(jnp.sum(jnp.cross(v1, v2) * rel_ij, axis=1))
    phi1 = phi * flag

    # raw per-edge scalars (smearing is fused into the interaction kernel)
    vals = jnp.stack([d1, d2, theta1, d3, theta2, phi1], axis=1)       # [E, 6]
    vals3 = (jnp.zeros((E_pad, 6), jnp.float32).at[:E].set(vals)
             .reshape(NUM_SHARDS, E_s, 6))

    # padded edges get sentinel N_pad -> all-zero one-hot rows/cols, so their
    # (nonzero) edge_out never reaches the scatter.  Do not clamp these indices.
    idx = jnp.stack([i, j, k, p], axis=1).astype(jnp.int32)
    idx_pad = jnp.full((E_pad, 4), N_pad, jnp.int32).at[:E].set(idx)
    idx3 = idx_pad.reshape(NUM_SHARDS, E_s, 4)
    idxt3 = idx_pad[:, 0].reshape(NUM_SHARDS, 1, E_s)       # lane-major scatter index

    # interaction blocks: one fused, sharded, edge-tiled kernel each.
    # Residual add and per-shard sum stay in f32 JAX glue (tiny).
    for blk in params["interactions"]:
        acc = interaction(vals3, idx3, idxt3, x_node.astype(jnp.bfloat16),
                          geo_consts, blk, tile_e)          # [NUM_SHARDS, N_pad, H]
        x_node = x_node + jnp.sum(acc, axis=0)

    # head: lin1 -> ReLU -> lin2 (fused 2-layer MLP kernel)
    out = mlp2(x_node, *params["head"])
    return out[:N]


# ----------------------------------------------------------------------------
# Main
# ----------------------------------------------------------------------------

if __name__ == "__main__":
    key = jax.random.PRNGKey(0)

    N = 8                 # nodes
    E = 16                # third-order edge quadruplets
    C_IN = 4              # input node feature channels
    HIDDEN = 32
    OUT = 1
    NUM_INTERACTIONS = 3
    NUM_GAUSSIANS = (50, 6, 12)
    CUTOFF = 10.0

    k_x, k_pos, k_idx, k_params = jax.random.split(key, 4)
    x = jax.random.normal(k_x, (N, C_IN), jnp.float32)
    pos = jax.random.normal(k_pos, (N, 3), jnp.float32)
    edge_index_3rd = tuple(
        jax.random.randint(kk, (E,), 0, N, dtype=jnp.int32)
        for kk in jax.random.split(k_idx, 4)
    )

    params = make_params(k_params, C_IN, HIDDEN, OUT,
                         NUM_INTERACTIONS, NUM_GAUSSIANS)
    geo_consts = make_geo_consts(CUTOFF, NUM_GAUSSIANS)

    fwd = jax.jit(gtmp_forward)
    out = fwd(params, geo_consts, x, pos, edge_index_3rd)
    out = jax.block_until_ready(out)
    assert out.shape == (N, OUT)
    print("KERNEL_OK")
</pallas_src>

<mosaic_0001>
module attributes {stable_mosaic.version = 11 : i64} {
  func.func @_mlp2_kernel(%arg0: i32, %arg1: memref<8x4xf32, #tpu.memory_space<vmem>>, %arg2: memref<4x32xbf16, #tpu.memory_space<vmem>>, %arg3: memref<1x32xf32, #tpu.memory_space<vmem>>, %arg4: memref<32x32xbf16, #tpu.memory_space<vmem>>, %arg5: memref<1x32xf32, #tpu.memory_space<vmem>>, %arg6: memref<8x32xf32, #tpu.memory_space<vmem>>) attributes {dimension_semantics = [#tpu.dimension_semantics<parallel>], iteration_bounds = array<i64: 1>, scalar_prefetch = 0 : i64, scratch_operands = 0 : i64, tpu.core_type = #tpu.core_type<tc>, window_params = [{transform_indices = @transform_0, window_bounds = array<i64: 8, 4>}, {pipeline_mode = #tpu.pipeline_mode<synchronous>, transform_indices = @transform_1, window_bounds = array<i64: 4, 32>}, {pipeline_mode = #tpu.pipeline_mode<synchronous>, transform_indices = @transform_2, window_bounds = array<i64: 1, 32>}, {pipeline_mode = #tpu.pipeline_mode<synchronous>, transform_indices = @transform_3, window_bounds = array<i64: 32, 32>}, {pipeline_mode = #tpu.pipeline_mode<synchronous>, transform_indices = @transform_4, window_bounds = array<i64: 1, 32>}, {transform_indices = @transform_5, window_bounds = array<i64: 8, 32>}]} {
    %c0 = arith.constant 0 : index
    %c0_0 = arith.constant 0 : index
    %0 = vector.load %arg1[%c0, %c0_0] : memref<8x4xf32, #tpu.memory_space<vmem>>, vector<8x4xf32>
    %1 = arith.truncf %0 : vector<8x4xf32> to vector<8x4xbf16>
    %c0_1 = arith.constant 0 : index
    %c0_2 = arith.constant 0 : index
    %2 = vector.load %arg2[%c0_1, %c0_2] : memref<4x32xbf16, #tpu.memory_space<vmem>>, vector<4x32xbf16>
    %cst = arith.constant dense<0.000000e+00> : vector<8x32xf32>
    %3 = tpu.matmul %1, %2, %cst {dimension_numbers = #tpu.dot_dimension_numbers<[1], [0], [0], [1], [0, 0, 1, 1], [], []>} : vector<8x4xbf16>, vector<4x32xbf16>, vector<8x32xf32> -> vector<8x32xf32>
    %c0_3 = arith.constant 0 : index
    %c0_4 = arith.constant 0 : index
    %4 = vector.load %arg3[%c0_3, %c0_4] : memref<1x32xf32, #tpu.memory_space<vmem>>, vector<1x32xf32>
    %5 = vector.broadcast %4 : vector<1x32xf32> to vector<8x32xf32>
    %6 = arith.addf %3, %5 : vector<8x32xf32>
    %cst_5 = arith.constant 0.000000e+00 : f32
    %7 = vector.broadcast %cst_5 : f32 to vector<8x32xf32>
    %8 = arith.maximumf %6, %7 : vector<8x32xf32>
    %9 = arith.truncf %8 : vector<8x32xf32> to vector<8x32xbf16>
    %c0_6 = arith.constant 0 : index
    %c0_7 = arith.constant 0 : index
    %10 = vector.load %arg4[%c0_6, %c0_7] : memref<32x32xbf16, #tpu.memory_space<vmem>>, vector<32x32xbf16>
    %cst_8 = arith.constant dense<0.000000e+00> : vector<8x32xf32>
    %11 = tpu.matmul %9, %10, %cst_8 {dimension_numbers = #tpu.dot_dimension_numbers<[1], [0], [0], [1], [0, 0, 1, 1], [], []>} : vector<8x32xbf16>, vector<32x32xbf16>, vector<8x32xf32> -> vector<8x32xf32>
    %c0_9 = arith.constant 0 : index
    %c0_10 = arith.constant 0 : index
    %12 = vector.load %arg5[%c0_9, %c0_10] : memref<1x32xf32, #tpu.memory_space<vmem>>, vector<1x32xf32>
    %13 = vector.broadcast %12 : vector<1x32xf32> to vector<8x32xf32>
    %14 = arith.addf %11, %13 : vector<8x32xf32>
    %c0_11 = arith.constant 0 : index
    %c0_12 = arith.constant 0 : index
    %15 = vector.load %arg6[%c0_11, %c0_12] : memref<8x32xf32, #tpu.memory_space<vmem>>, vector<8x32xf32>
    tpu.vector_store %arg6[%c0_11, %c0_12], %14 {strides = array<i32>} : memref<8x32xf32, #tpu.memory_space<vmem>>, vector<8x32xf32>,
    return
  }
  func.func @transform_0(%arg0: i32) -> (i32, i32) {
    %c0_i32 = arith.constant 0 : i32
    %c0_i32_0 = arith.constant 0 : i32
    return %arg0, %c0_i32 : i32, i32
  }
  func.func @transform_1(%arg0: i32) -> (i32, i32) {
    %c0_i32 = arith.constant 0 : i32
    %c0_i32_0 = arith.constant 0 : i32
    %c0_i32_1 = arith.constant 0 : i32
    return %c0_i32, %c0_i32_0 : i32, i32
  }
  func.func @transform_2(%arg0: i32) -> (i32, i32) {
    %c0_i32 = arith.constant 0 : i32
    %c0_i32_0 = arith.constant 0 : i32
    %c0_i32_1 = arith.constant 0 : i32
    return %c0_i32, %c0_i32_0 : i32, i32
  }
  func.func @transform_3(%arg0: i32) -> (i32, i32) {
    %c0_i32 = arith.constant 0 : i32
    %c0_i32_0 = arith.constant 0 : i32
    %c0_i32_1 = arith.constant 0 : i32
    return %c0_i32, %c0_i32_0 : i32, i32
  }
  func.func @transform_4(%arg0: i32) -> (i32, i32) {
    %c0_i32 = arith.constant 0 : i32
    %c0_i32_0 = arith.constant 0 : i32
    %c0_i32_1 = arith.constant 0 : i32
    return %c0_i32, %c0_i32_0 : i32, i32
  }
  func.func @transform_5(%arg0: i32) -> (i32, i32) {
    %c0_i32 = arith.constant 0 : i32
    %c0_i32_0 = arith.constant 0 : i32
    return %arg0, %c0_i32 : i32, i32
  }
}

module attributes {stable_mosaic.version = 11 : i64} {
  func.func @_interaction_kernel(%arg0: i32, %arg1: i32, %arg2: memref<1x8x6xf32, #tpu.memory_space<vmem>>, %arg3: memref<1x8x4xi32, #tpu.memory_space<vmem>>, %arg4: memref<1x1x8xi32, #tpu.memory_space<vmem>>, %arg5: memref<8x32xbf16, #tpu.memory_space<vmem>>, %arg6: memref<6x256xf32, #tpu.memory_space<vmem>>, %arg7: memref<1x256xf32, #tpu.memory_space<vmem>>, %arg8: memref<1x256xf32, #tpu.memory_space<vmem>>, %arg9: memref<256x96xbf16, #tpu.memory_space<vmem>>, %arg10: memref<1x96xf32, #tpu.memory_space<vmem>>, %arg11: memref<96x96xbf16, #tpu.memory_space<vmem>>, %arg12: memref<1x96xf32, #tpu.memory_space<vmem>>, %arg13: memref<224x128xbf16, #tpu.memory_space<vmem>>, %arg14: memref<1x128xf32, #tpu.memory_space<vmem>>, %arg15: memref<128x64xbf16, #tpu.memory_space<vmem>>, %arg16: memref<1x64xf32, #tpu.memory_space<vmem>>, %arg17: memref<64x32xbf16, #tpu.memory_space<vmem>>, %arg18: memref<1x32xf32, #tpu.memory_space<vmem>>, %arg19: memref<1x8x32xf32, #tpu.memory_space<vmem>>) attributes {dimension_semantics = [#tpu.dimension_semantics<parallel>, #tpu.dimension_semantics<arbitrary>], iteration_bounds = array<i64: 2, 1>, scalar_prefetch = 0 : i64, scratch_operands = 0 : i64, tpu.core_type = #tpu.core_type<tc>, window_params = [{transform_indices = @transform_0, window_bounds = array<i64: 1, 8, 6>}, {transform_indices = @transform_1, window_bounds = array<i64: 1, 8, 4>}, {transform_indices = @transform_2, window_bounds = array<i64: 1, 1, 8>}, {pipeline_mode = #tpu.pipeline_mode<synchronous>, transform_indices = @transform_3, window_bounds = array<i64: 8, 32>}, {pipeline_mode = #tpu.pipeline_mode<synchronous>, transform_indices = @transform_4, window_bounds = array<i64: 6, 256>}, {pipeline_mode = #tpu.pipeline_mode<synchronous>, transform_indices = @transform_5, window_bounds = array<i64: 1, 256>}, {pipeline_mode = #tpu.pipeline_mode<synchronous>, transform_indices = @transform_6, window_bounds = array<i64: 1, 256>}, {pipeline_mode = #tpu.pipeline_mode<synchronous>, transform_indices = @transform_7, window_bounds = array<i64: 256, 96>}, {pipeline_mode = #tpu.pipeline_mode<synchronous>, transform_indices = @transform_8, window_bounds = array<i64: 1, 96>}, {pipeline_mode = #tpu.pipeline_mode<synchronous>, transform_indices = @transform_9, window_bounds = array<i64: 96, 96>}, {pipeline_mode = #tpu.pipeline_mode<synchronous>, transform_indices = @transform_10, window_bounds = array<i64: 1, 96>}, {pipeline_mode = #tpu.pipeline_mode<synchronous>, transform_indices = @transform_11, window_bounds = array<i64: 224, 128>}, {pipeline_mode = #tpu.pipeline_mode<synchronous>, transform_indices = @transform_12, window_bounds = array<i64: 1, 128>}, {pipeline_mode = #tpu.pipeline_mode<synchronous>, transform_indices = @transform_13, window_bounds = array<i64: 128, 64>}, {pipeline_mode = #tpu.pipeline_mode<synchronous>, transform_indices = @transform_14, window_bounds = array<i64: 1, 64>}, {pipeline_mode = #tpu.pipeline_mode<synchronous>, transform_indices = @transform_15, window_bounds = array<i64: 64, 32>}, {pipeline_mode = #tpu.pipeline_mode<synchronous>, transform_indices = @transform_16, window_bounds = array<i64: 1, 32>}, {transform_indices = @transform_17, window_bounds = array<i64: 1, 8, 32>}]} {
    %c0_i32 = arith.constant 0 : i32
    %0 = arith.cmpi eq, %arg1, %c0_i32 : i32
    %1 = arith.extui %0 : i1 to i32
    %c0_i32_0 = arith.constant 0 : i32
    %2 = arith.cmpi ne, %1, %c0_i32_0 : i32
    scf.if %2 {
      %cst_56 = arith.constant 0.000000e+00 : f32
      %100 = vector.broadcast %cst_56 : f32 to vector<8x32xf32>
      %c0_57 = arith.constant 0 : index
      %c0_58 = arith.constant 0 : index
      %c0_59 = arith.constant 0 : index
      %101 = vector.load %arg19[%c0_57, %c0_58, %c0_59] : memref<1x8x32xf32, #tpu.memory_space<vmem>>, vector<1x8x32xf32>
      %102 = vector.shape_cast %101 : vector<1x8x32xf32> to vector<8x32xf32>
      %103 = vector.shape_cast %100 : vector<8x32xf32> to vector<1x8x32xf32>
      tpu.vector_store %arg19[%c0_57, %c0_58, %c0_59], %103 {strides = array<i32>} : memref<1x8x32xf32, #tpu.memory_space<vmem>>, vector<1x8x32xf32>,
    } else {
    }
    %c0 = arith.constant 0 : index
    %c0_1 = arith.constant 0 : index
    %c0_2 = arith.constant 0 : index
    %3 = vector.load %arg2[%c0, %c0_1, %c0_2] : memref<1x8x6xf32, #tpu.memory_space<vmem>>, vector<1x8x6xf32>
    %4 = vector.shape_cast %3 : vector<1x8x6xf32> to vector<8x6xf32>
    %c0_3 = arith.constant 0 : index
    %c0_4 = arith.constant 0 : index
    %5 = vector.load %arg6[%c0_3, %c0_4] : memref<6x256xf32, #tpu.memory_space<vmem>>, vector<6x256xf32>
    %cst = arith.constant dense<0.000000e+00> : vector<8x256xf32>
    %6 = tpu.matmul %4, %5, %cst {dimension_numbers = #tpu.dot_dimension_numbers<[1], [0], [0], [1], [0, 0, 1, 1], [], []>} : vector<8x6xf32>, vector<6x256xf32>, vector<8x256xf32> -> vector<8x256xf32>
    %c0_5 = arith.constant 0 : index
    %c0_6 = arith.constant 0 : index
    %7 = vector.load %arg7[%c0_5, %c0_6] : memref<1x256xf32, #tpu.memory_space<vmem>>, vector<1x256xf32>
    %8 = vector.broadcast %7 : vector<1x256xf32> to vector<8x256xf32>
    %9 = arith.subf %6, %8 : vector<8x256xf32>
    %c0_7 = arith.constant 0 : index
    %c0_8 = arith.constant 0 : index
    %10 = vector.load %arg8[%c0_7, %c0_8] : memref<1x256xf32, #tpu.memory_space<vmem>>, vector<1x256xf32>
    %11 = vector.broadcast %10 : vector<1x256xf32> to vector<8x256xf32>
    %12 = arith.mulf %11, %9 : vector<8x256xf32>
    %13 = arith.mulf %12, %9 : vector<8x256xf32>
    %14 = math.exp %13 : vector<8x256xf32>
    %15 = arith.truncf %14 : vector<8x256xf32> to vector<8x256xbf16>
    %c0_9 = arith.constant 0 : index
    %c0_10 = arith.constant 0 : index
    %16 = vector.load %arg9[%c0_9, %c0_10] : memref<256x96xbf16, #tpu.memory_space<vmem>>, vector<256x96xbf16>
    %cst_11 = arith.constant dense<0.000000e+00> : vector<8x96xf32>
    %17 = tpu.matmul %15, %16, %cst_11 {dimension_numbers = #tpu.dot_dimension_numbers<[1], [0], [0], [1], [0, 0, 1, 1], [], []>} : vector<8x256xbf16>, vector<256x96xbf16>, vector<8x96xf32> -> vector<8x96xf32>
    %c0_12 = arith.constant 0 : index
    %c0_13 = arith.constant 0 : index
    %18 = vector.load %arg10[%c0_12, %c0_13] : memref<1x96xf32, #tpu.memory_space<vmem>>, vector<1x96xf32>
    %19 = vector.broadcast %18 : vector<1x96xf32> to vector<8x96xf32>
    %20 = arith.addf %17, %19 : vector<8x96xf32>
    %cst_14 = arith.constant 0.000000e+00 : f32
    %21 = vector.broadcast %cst_14 : f32 to vector<8x96xf32>
    %22 = arith.maximumf %20, %21 : vector<8x96xf32>
    %23 = arith.truncf %22 : vector<8x96xf32> to vector<8x96xbf16>
    %c0_15 = arith.constant 0 : index
    %c0_16 = arith.constant 0 : index
    %24 = vector.load %arg11[%c0_15, %c0_16] : memref<96x96xbf16, #tpu.memory_space<vmem>>, vector<96x96xbf16>
    %cst_17 = arith.constant dense<0.000000e+00> : vector<8x96xf32>
    %25 = tpu.matmul %23, %24, %cst_17 {dimension_numbers = #tpu.dot_dimension_numbers<[1], [0], [0], [1], [0, 0, 1, 1], [], []>} : vector<8x96xbf16>, vector<96x96xbf16>, vector<8x96xf32> -> vector<8x96xf32>
    %c0_18 = arith.constant 0 : index
    %c0_19 = arith.constant 0 : index
    %26 = vector.load %arg12[%c0_18, %c0_19] : memref<1x96xf32, #tpu.memory_space<vmem>>, vector<1x96xf32>
    %27 = vector.broadcast %26 : vector<1x96xf32> to vector<8x96xf32>
    %28 = arith.addf %25, %27 : vector<8x96xf32>
    %c0_20 = arith.constant 0 : index
    %c0_21 = arith.constant 0 : index
    %c0_22 = arith.constant 0 : index
    %29 = vector.load %arg3[%c0_20, %c0_21, %c0_22] : memref<1x8x4xi32, #tpu.memory_space<vmem>>, vector<1x8x4xi32>
    %30 = vector.shape_cast %29 : vector<1x8x4xi32> to vector<8x4xi32>
    %c0_23 = arith.constant 0 : index
    %c0_24 = arith.constant 0 : index
    %31 = vector.load %arg5[%c0_23, %c0_24] : memref<8x32xbf16, #tpu.memory_space<vmem>>, vector<8x32xbf16>
    %32 = tpu.iota {dimensions = array<i32: 1>} : vector<8x8xi32>
    %33 = vector.extract_strided_slice %30 {offsets = [0, 0], sizes = [8, 1], strides = [1, 1]} : vector<8x4xi32> to vector<8x1xi32>
    %34 = vector.broadcast %33 : vector<8x1xi32> to vector<8x8xi32>
    %35 = arith.cmpi eq, %32, %34 : vector<8x8xi32>
    %36 = arith.extui %35 : vector<8x8xi1> to vector<8x8xi32>
    %37 = arith.sitofp %36 : vector<8x8xi32> to vector<8x8xf32>
    %38 = arith.truncf %37 : vector<8x8xf32> to vector<8x8xbf16>
    %cst_25 = arith.constant dense<0.000000e+00> : vector<8x32xf32>
    %39 = tpu.matmul %38, %31, %cst_25 {dimension_numbers = #tpu.dot_dimension_numbers<[1], [0], [0], [1], [0, 0, 1, 1], [], []>} : vector<8x8xbf16>, vector<8x32xbf16>, vector<8x32xf32> -> vector<8x32xf32>
    %40 = vector.extract_strided_slice %30 {offsets = [0, 1], sizes = [8, 1], strides = [1, 1]} : vector<8x4xi32> to vector<8x1xi32>
    %41 = vector.broadcast %40 : vector<8x1xi32> to vector<8x8xi32>
    %42 = arith.cmpi eq, %32, %41 : vector<8x8xi32>
    %43 = arith.extui %42 : vector<8x8xi1> to vector<8x8xi32>
    %44 = arith.sitofp %43 : vector<8x8xi32> to vector<8x8xf32>
    %45 = arith.truncf %44 : vector<8x8xf32> to vector<8x8xbf16>
    %cst_26 = arith.constant dense<0.000000e+00> : vector<8x32xf32>
    %46 = tpu.matmul %45, %31, %cst_26 {dimension_numbers = #tpu.dot_dimension_numbers<[1], [0], [0], [1], [0, 0, 1, 1], [], []>} : vector<8x8xbf16>, vector<8x32xbf16>, vector<8x32xf32> -> vector<8x32xf32>
    %47 = vector.extract_strided_slice %30 {offsets = [0, 2], sizes = [8, 1], strides = [1, 1]} : vector<8x4xi32> to vector<8x1xi32>
    %48 = vector.broadcast %47 : vector<8x1xi32> to vector<8x8xi32>
    %49 = arith.cmpi eq, %32, %48 : vector<8x8xi32>
    %50 = arith.extui %49 : vector<8x8xi1> to vector<8x8xi32>
    %51 = arith.sitofp %50 : vector<8x8xi32> to vector<8x8xf32>
    %52 = arith.truncf %51 : vector<8x8xf32> to vector<8x8xbf16>
    %cst_27 = arith.constant dense<0.000000e+00> : vector<8x32xf32>
    %53 = tpu.matmul %52, %31, %cst_27 {dimension_numbers = #tpu.dot_dimension_numbers<[1], [0], [0], [1], [0, 0, 1, 1], [], []>} : vector<8x8xbf16>, vector<8x32xbf16>, vector<8x32xf32> -> vector<8x32xf32>
    %54 = vector.extract_strided_slice %30 {offsets = [0, 3], sizes = [8, 1], strides = [1, 1]} : vector<8x4xi32> to vector<8x1xi32>
    %55 = vector.broadcast %54 : vector<8x1xi32> to vector<8x8xi32>
    %56 = arith.cmpi eq, %32, %55 : vector<8x8xi32>
    %57 = arith.extui %56 : vector<8x8xi1> to vector<8x8xi32>
    %58 = arith.sitofp %57 : vector<8x8xi32> to vector<8x8xf32>
    %59 = arith.truncf %58 : vector<8x8xf32> to vector<8x8xbf16>
    %cst_28 = arith.constant dense<0.000000e+00> : vector<8x32xf32>
    %60 = tpu.matmul %59, %31, %cst_28 {dimension_numbers = #tpu.dot_dimension_numbers<[1], [0], [0], [1], [0, 0, 1, 1], [], []>} : vector<8x8xbf16>, vector<8x32xbf16>, vector<8x32xf32> -> vector<8x32xf32>
    %61 = tpu.concatenate %39, %46, %53, %60, %28 in 1 : vector<8x32xf32>, vector<8x32xf32>, vector<8x32xf32>, vector<8x32xf32>, vector<8x96xf32> -> vector<8x224xf32>
    %62 = arith.truncf %61 : vector<8x224xf32> to vector<8x224xbf16>
    %c0_29 = arith.constant 0 : index
    %c0_30 = arith.constant 0 : index
    %63 = vector.load %arg13[%c0_29, %c0_30] : memref<224x128xbf16, #tpu.memory_space<vmem>>, vector<224x128xbf16>
    %cst_31 = arith.constant dense<0.000000e+00> : vector<8x128xf32>
    %64 = tpu.matmul %62, %63, %cst_31 {dimension_numbers = #tpu.dot_dimension_numbers<[1], [0], [0], [1], [0, 0, 1, 1], [], []>} : vector<8x224xbf16>, vector<224x128xbf16>, vector<8x128xf32> -> vector<8x128xf32>
    %c0_32 = arith.constant 0 : index
    %c0_33 = arith.constant 0 : index
    %65 = vector.load %arg14[%c0_32, %c0_33] : memref<1x128xf32, #tpu.memory_space<vmem>>, vector<1x128xf32>
    %66 = vector.broadcast %65 : vector<1x128xf32> to vector<8x128xf32>
    %67 = arith.addf %64, %66 : vector<8x128xf32>
    %cst_34 = arith.constant 0.000000e+00 : f32
    %68 = vector.broadcast %cst_34 : f32 to vector<8x128xf32>
    %69 = arith.maximumf %67, %68 : vector<8x128xf32>
    %70 = arith.truncf %69 : vector<8x128xf32> to vector<8x128xbf16>
    %c0_35 = arith.constant 0 : index
    %c0_36 = arith.constant 0 : index
    %71 = vector.load %arg15[%c0_35, %c0_36] : memref<128x64xbf16, #tpu.memory_space<vmem>>, vector<128x64xbf16>
    %cst_37 = arith.constant dense<0.000000e+00> : vector<8x64xf32>
    %72 = tpu.matmul %70, %71, %cst_37 {dimension_numbers = #tpu.dot_dimension_numbers<[1], [0], [0], [1], [0, 0, 1, 1], [], []>} : vector<8x128xbf16>, vector<128x64xbf16>, vector<8x64xf32> -> vector<8x64xf32>
    %c0_38 = arith.constant 0 : index
    %c0_39 = arith.constant 0 : index
    %73 = vector.load %arg16[%c0_38, %c0_39] : memref<1x64xf32, #tpu.memory_space<vmem>>, vector<1x64xf32>
    %74 = vector.broadcast %73 : vector<1x64xf32> to vector<8x64xf32>
    %75 = arith.addf %72, %74 : vector<8x64xf32>
    %cst_40 = arith.constant 0.000000e+00 : f32
    %76 = vector.broadcast %cst_40 : f32 to vector<8x64xf32>
    %77 = arith.maximumf %75, %76 : vector<8x64xf32>
    %78 = arith.truncf %77 : vector<8x64xf32> to vector<8x64xbf16>
    %c0_41 = arith.constant 0 : index
    %c0_42 = arith.constant 0 : index
    %79 = vector.load %arg17[%c0_41, %c0_42] : memref<64x32xbf16, #tpu.memory_space<vmem>>, vector<64x32xbf16>
    %cst_43 = arith.constant dense<0.000000e+00> : vector<8x32xf32>
    %80 = tpu.matmul %78, %79, %cst_43 {dimension_numbers = #tpu.dot_dimension_numbers<[1], [0], [0], [1], [0, 0, 1, 1], [], []>} : vector<8x64xbf16>, vector<64x32xbf16>, vector<8x32xf32> -> vector<8x32xf32>
    %c0_44 = arith.constant 0 : index
    %c0_45 = arith.constant 0 : index
    %81 = vector.load %arg18[%c0_44, %c0_45] : memref<1x32xf32, #tpu.memory_space<vmem>>, vector<1x32xf32>
    %82 = vector.broadcast %81 : vector<1x32xf32> to vector<8x32xf32>
    %83 = arith.addf %80, %82 : vector<8x32xf32>
    %84 = tpu.iota {dimensions = array<i32: 0>} : vector<8x8xi32>
    %c0_46 = arith.constant 0 : index
    %c0_47 = arith.constant 0 : index
    %c0_48 = arith.constant 0 : index
    %85 = vector.load %arg4[%c0_46, %c0_47, %c0_48] : memref<1x1x8xi32, #tpu.memory_space<vmem>>, vector<1x1x8xi32>
    %86 = vector.shape_cast %85 : vector<1x1x8xi32> to vector<1x8xi32>
    %87 = vector.broadcast %86 : vector<1x8xi32> to vector<8x8xi32>
    %88 = arith.cmpi eq, %84, %87 : vector<8x8xi32>
    %89 = arith.extui %88 : vector<8x8xi1> to vector<8x8xi32>
    %90 = arith.sitofp %89 : vector<8x8xi32> to vector<8x8xf32>
    %91 = arith.truncf %90 : vector<8x8xf32> to vector<8x8xbf16>
    %c0_49 = arith.constant 0 : index
    %c0_50 = arith.constant 0 : index
    %c0_51 = arith.constant 0 : index
    %92 = vector.load %arg19[%c0_49, %c0_50, %c0_51] : memref<1x8x32xf32, #tpu.memory_space<vmem>>, vector<1x8x32xf32>
    %93 = vector.shape_cast %92 : vector<1x8x32xf32> to vector<8x32xf32>
    %94 = arith.truncf %83 : vector<8x32xf32> to vector<8x32xbf16>
    %cst_52 = arith.constant dense<0.000000e+00> : vector<8x32xf32>
    %95 = tpu.matmul %91, %94, %cst_52 {dimension_numbers = #tpu.dot_dimension_numbers<[1], [0], [0], [1], [0, 0, 1, 1], [], []>} : vector<8x8xbf16>, vector<8x32xbf16>, vector<8x32xf32> -> vector<8x32xf32>
    %96 = arith.addf %93, %95 : vector<8x32xf32>
    %c0_53 = arith.constant 0 : index
    %c0_54 = arith.constant 0 : index
    %c0_55 = arith.constant 0 : index
    %97 = vector.load %arg19[%c0_53, %c0_54, %c0_55] : memref<1x8x32xf32, #tpu.memory_space<vmem>>, vector<1x8x32xf32>
    %98 = vector.shape_cast %97 : vector<1x8x32xf32> to vector<8x32xf32>
    %99 = vector.shape_cast %96 : vector<8x32xf32> to vector<1x8x32xf32>
    tpu.vector_store %arg19[%c0_53, %c0_54, %c0_55], %99 {strides = array<i32>} : memref<1x8x32xf32, #tpu.memory_space<vmem>>, vector<1x8x32xf32>,
    return
  }
  func.func @transform_0(%arg0: i32, %arg1: i32) -> (i32, i32, i32) {
    %c0_i32 = arith.constant 0 : i32
    %c0_i32_0 = arith.constant 0 : i32
    return %arg0, %arg1, %c0_i32 : i32, i32, i32
  }
  func.func @transform_1(%arg0: i32, %arg1: i32) -> (i32, i32, i32) {
    %c0_i32 = arith.constant 0 : i32
    %c0_i32_0 = arith.constant 0 : i32
    return %arg0, %arg1, %c0_i32 : i32, i32, i32
  }
  func.func @transform_2(%arg0: i32, %arg1: i32) -> (i32, i32, i32) {
    %c0_i32 = arith.constant 0 : i32
    %c0_i32_0 = arith.constant 0 : i32
    return %arg0, %c0_i32, %arg1 : i32, i32, i32
  }
  func.func @transform_3(%arg0: i32, %arg1: i32) -> (i32, i32) {
    %c0_i32 = arith.constant 0 : i32
    %c0_i32_0 = arith.constant 0 : i32
    %c0_i32_1 = arith.constant 0 : i32
    return %c0_i32, %c0_i32_0 : i32, i32
  }
  func.func @transform_4(%arg0: i32, %arg1: i32) -> (i32, i32) {
    %c0_i32 = arith.constant 0 : i32
    %c0_i32_0 = arith.constant 0 : i32
    %c0_i32_1 = arith.constant 0 : i32
    return %c0_i32, %c0_i32_0 : i32, i32
  }
  func.func @transform_5(%arg0: i32, %arg1: i32) -> (i32, i32) {
    %c0_i32 = arith.constant 0 : i32
    %c0_i32_0 = arith.constant 0 : i32
    %c0_i32_1 = arith.constant 0 : i32
    return %c0_i32, %c0_i32_0 : i32, i32
  }
  func.func @transform_6(%arg0: i32, %arg1: i32) -> (i32, i32) {
    %c0_i32 = arith.constant 0 : i32
    %c0_i32_0 = arith.constant 0 : i32
    %c0_i32_1 = arith.constant 0 : i32
    return %c0_i32, %c0_i32_0 : i32, i32
  }
  func.func @transform_7(%arg0: i32, %arg1: i32) -> (i32, i32) {
    %c0_i32 = arith.constant 0 : i32
    %c0_i32_0 = arith.constant 0 : i32
    %c0_i32_1 = arith.constant 0 : i32
    return %c0_i32, %c0_i32_0 : i32, i32
  }
  func.func @transform_8(%arg0: i32, %arg1: i32) -> (i32, i32) {
    %c0_i32 = arith.constant 0 : i32
    %c0_i32_0 = arith.constant 0 : i32
    %c0_i32_1 = arith.constant 0 : i32
    return %c0_i32, %c0_i32_0 : i32, i32
  }
  func.func @transform_9(%arg0: i32, %arg1: i32) -> (i32, i32) {
    %c0_i32 = arith.constant 0 : i32
    %c0_i32_0 = arith.constant 0 : i32
    %c0_i32_1 = arith.constant 0 : i32
    return %c0_i32, %c0_i32_0 : i32, i32
  }
  func.func @transform_10(%arg0: i32, %arg1: i32) -> (i32, i32) {
    %c0_i32 = arith.constant 0 : i32
    %c0_i32_0 = arith.constant 0 : i32
    %c0_i32_1 = arith.constant 0 : i32
    return %c0_i32, %c0_i32_0 : i32, i32
  }
  func.func @transform_11(%arg0: i32, %arg1: i32) -> (i32, i32) {
    %c0_i32 = arith.constant 0 : i32
    %c0_i32_0 = arith.constant 0 : i32
    %c0_i32_1 = arith.constant 0 : i32
    return %c0_i32, %c0_i32_0 : i32, i32
  }
  func.func @transform_12(%arg0: i32, %arg1: i32) -> (i32, i32) {
    %c0_i32 = arith.constant 0 : i32
    %c0_i32_0 = arith.constant 0 : i32
    %c0_i32_1 = arith.constant 0 : i32
    return %c0_i32, %c0_i32_0 : i32, i32
  }
  func.func @transform_13(%arg0: i32, %arg1: i32) -> (i32, i32) {
    %c0_i32 = arith.constant 0 : i32
    %c0_i32_0 = arith.constant 0 : i32
    %c0_i32_1 = arith.constant 0 : i32
    return %c0_i32, %c0_i32_0 : i32, i32
  }
  func.func @transform_14(%arg0: i32, %arg1: i32) -> (i32, i32) {
    %c0_i32 = arith.constant 0 : i32
    %c0_i32_0 = arith.constant 0 : i32
    %c0_i32_1 = arith.constant 0 : i32
    return %c0_i32, %c0_i32_0 : i32, i32
  }
  func.func @transform_15(%arg0: i32, %arg1: i32) -> (i32, i32) {
    %c0_i32 = arith.constant 0 : i32
    %c0_i32_0 = arith.constant 0 : i32
    %c0_i32_1 = arith.constant 0 : i32
    return %c0_i32, %c0_i32_0 : i32, i32
  }
  func.func @transform_16(%arg0: i32, %arg1: i32) -> (i32, i32) {
    %c0_i32 = arith.constant 0 : i32
    %c0_i32_0 = arith.constant 0 : i32
    %c0_i32_1 = arith.constant 0 : i32
    return %c0_i32, %c0_i32_0 : i32, i32
  }
  func.func @transform_17(%arg0: i32, %arg1: i32) -> (i32, i32, i32) {
    %c0_i32 = arith.constant 0 : i32
    %c0_i32_0 = arith.constant 0 : i32
    %c0_i32_1 = arith.constant 0 : i32
    return %arg0, %c0_i32, %c0_i32_0 : i32, i32, i32
  }
}

module attributes {stable_mosaic.version = 11 : i64} {
  func.func @_mlp2_kernel(%arg0: i32, %arg1: memref<8x32xf32, #tpu.memory_space<vmem>>, %arg2: memref<32x16xbf16, #tpu.memory_space<vmem>>, %arg3: memref<1x16xf32, #tpu.memory_space<vmem>>, %arg4: memref<16x1xbf16, #tpu.memory_space<vmem>>, %arg5: memref<1x1xf32, #tpu.memory_space<vmem>>, %arg6: memref<8x1xf32, #tpu.memory_space<vmem>>) attributes {dimension_semantics = [#tpu.dimension_semantics<parallel>], iteration_bounds = array<i64: 1>, scalar_prefetch = 0 : i64, scratch_operands = 0 : i64, tpu.core_type = #tpu.core_type<tc>, window_params = [{transform_indices = @transform_0, window_bounds = array<i64: 8, 32>}, {pipeline_mode = #tpu.pipeline_mode<synchronous>, transform_indices = @transform_1, window_bounds = array<i64: 32, 16>}, {pipeline_mode = #tpu.pipeline_mode<synchronous>, transform_indices = @transform_2, window_bounds = array<i64: 1, 16>}, {pipeline_mode = #tpu.pipeline_mode<synchronous>, transform_indices = @transform_3, window_bounds = array<i64: 16, 1>}, {pipeline_mode = #tpu.pipeline_mode<synchronous>, transform_indices = @transform_4, window_bounds = array<i64: 1, 1>}, {transform_indices = @transform_5, window_bounds = array<i64: 8, 1>}]} {
    %c0 = arith.constant 0 : index
    %c0_0 = arith.constant 0 : index
    %0 = vector.load %arg1[%c0, %c0_0] : memref<8x32xf32, #tpu.memory_space<vmem>>, vector<8x32xf32>
    %1 = arith.truncf %0 : vector<8x32xf32> to vector<8x32xbf16>
    %c0_1 = arith.constant 0 : index
    %c0_2 = arith.constant 0 : index
    %2 = vector.load %arg2[%c0_1, %c0_2] : memref<32x16xbf16, #tpu.memory_space<vmem>>, vector<32x16xbf16>
    %cst = arith.constant dense<0.000000e+00> : vector<8x16xf32>
    %3 = tpu.matmul %1, %2, %cst {dimension_numbers = #tpu.dot_dimension_numbers<[1], [0], [0], [1], [0, 0, 1, 1], [], []>} : vector<8x32xbf16>, vector<32x16xbf16>, vector<8x16xf32> -> vector<8x16xf32>
    %c0_3 = arith.constant 0 : index
    %c0_4 = arith.constant 0 : index
    %4 = vector.load %arg3[%c0_3, %c0_4] : memref<1x16xf32, #tpu.memory_space<vmem>>, vector<1x16xf32>
    %5 = vector.broadcast %4 : vector<1x16xf32> to vector<8x16xf32>
    %6 = arith.addf %3, %5 : vector<8x16xf32>
    %cst_5 = arith.constant 0.000000e+00 : f32
    %7 = vector.broadcast %cst_5 : f32 to vector<8x16xf32>
    %8 = arith.maximumf %6, %7 : vector<8x16xf32>
    %9 = arith.truncf %8 : vector<8x16xf32> to vector<8x16xbf16>
    %c0_6 = arith.constant 0 : index
    %c0_7 = arith.constant 0 : index
    %10 = vector.load %arg4[%c0_6, %c0_7] : memref<16x1xbf16, #tpu.memory_space<vmem>>, vector<16x1xbf16>
    %cst_8 = arith.constant dense<0.000000e+00> : vector<8x1xf32>
    %11 = tpu.matmul %9, %10, %cst_8 {dimension_numbers = #tpu.dot_dimension_numbers<[1], [0], [0], [1], [0, 0, 1, 1], [], []>} : vector<8x16xbf16>, vector<16x1xbf16>, vector<8x1xf32> -> vector<8x1xf32>
    %c0_9 = arith.constant 0 : index
    %c0_10 = arith.constant 0 : index
    %12 = vector.load %arg5[%c0_9, %c0_10] : memref<1x1xf32, #tpu.memory_space<vmem>>, vector<1x1xf32>
    %13 = vector.broadcast %12 : vector<1x1xf32> to vector<8x1xf32>
    %14 = arith.addf %11, %13 : vector<8x1xf32>
    %c0_11 = arith.constant 0 : index
    %c0_12 = arith.constant 0 : index
    %15 = vector.load %arg6[%c0_11, %c0_12] : memref<8x1xf32, #tpu.memory_space<vmem>>, vector<8x1xf32>
    tpu.vector_store %arg6[%c0_11, %c0_12], %14 {strides = array<i32>} : memref<8x1xf32, #tpu.memory_space<vmem>>, vector<8x1xf32>,
    return
  }
  func.func @transform_0(%arg0: i32) -> (i32, i32) {
    %c0_i32 = arith.constant 0 : i32
    %c0_i32_0 = arith.constant 0 : i32
    return %arg0, %c0_i32 : i32, i32
  }
  func.func @transform_1(%arg0: i32) -> (i32, i32) {
    %c0_i32 = arith.constant 0 : i32
    %c0_i32_0 = arith.constant 0 : i32
    %c0_i32_1 = arith.constant 0 : i32
    return %c0_i32, %c0_i32_0 : i32, i32
  }
  func.func @transform_2(%arg0: i32) -> (i32, i32) {
    %c0_i32 = arith.constant 0 : i32
    %c0_i32_0 = arith.constant 0 : i32
    %c0_i32_1 = arith.constant 0 : i32
    return %c0_i32, %c0_i32_0 : i32, i32
  }
  func.func @transform_3(%arg0: i32) -> (i32, i32) {
    %c0_i32 = arith.constant 0 : i32
    %c0_i32_0 = arith.constant 0 : i32
    %c0_i32_1 = arith.constant 0 : i32
    return %c0_i32, %c0_i32_0 : i32, i32
  }
  func.func @transform_4(%arg0: i32) -> (i32, i32) {
    %c0_i32 = arith.constant 0 : i32
    %c0_i32_0 = arith.constant 0 : i32
    %c0_i32_1 = arith.constant 0 : i32
    return %c0_i32, %c0_i32_0 : i32, i32
  }
  func.func @transform_5(%arg0: i32) -> (i32, i32) {
    %c0_i32 = arith.constant 0 : i32
    %c0_i32_0 = arith.constant 0 : i32
    return %arg0, %c0_i32 : i32, i32
  }
}

</mosaic_0001>

<llo_original>
// kernel: squeeze.13
$region0: #{squeeze.13}
  %s0 = inlined_call_operand.vmem [shape: s32[16], index: 0, kind: input, shape index: {}]
  %s1 = inlined_call_operand.vmem [shape: s32[2,1,8], index: 1, kind: output, shape index: {}]
  $region1: #{squeeze.13} parent=0
    #allocation0 [shape = 'u8[4096]{0}', space=vmem, size = 0x1000, scoped, tag = 'scoped mem for output reshape']
    #allocation1 [shape = 'u8[4096]{0}', space=vmem, size = 0x1000, scoped, tag = 'scoped mem for input reshape']
    %s3 = sshllo.u32 0, 1
    %v4 = vld [vmem:[%s0] sm:%s3]
    %5 = vst [vmem:[#allocation1] sm:%s3] %v4
    %v6 = vld [vmem:[#allocation1] sm:$0x1]
    %vm7 = vcmask 64512
    %8 = vst.msk [vmem:[#allocation0] sm:$0x1] %vm7, %v6
    %v9 = vld [vmem:[#allocation1] sm:$0x1]
    %10 = vrot.lane.b32.xlu0 %v9, 120
    %v11 = vpop.permute.xlu0 %10
    %vm12 = vcmask 64512
    %s13 = scalar_lea.vmem [#allocation0], 1
    %14 = vst.msk [vmem:[%s13] sm:$0x1] %vm12, %v11
    %s16 = sshllo.u32 0, 2
    %v18 = vld [vmem:[#allocation0] sm:%s16]
    %s19 = sshllo.u32 0, 2
    %20 = vst [vmem:[%s1] sm:%s19] %v18

// kernel: gtmp_forward.5
$region0: #{gtmp_forward.5}
  #allocation0 [shape = 'u32[]', space=smem, size = 0x4, offset = 0x4, fixed_abs, tag = 'smem constant byte address 0x4 - core index']
  #allocation1 [shape = 'u32[144,128]{1,0:T(1,128)}', space=vmem, size = 0x12000, scoped, tag = 'internal scratch']
  %s0 = inlined_call_operand.vmem [shape: f32[8,4], index: 0, kind: input, shape index: {}]
  %s1 = inlined_call_operand.vmem [shape: bf16[4,32], index: 1, kind: input, shape index: {}]
  %s2 = inlined_call_operand.vmem [shape: f32[1,32], index: 2, kind: input, shape index: {}]
  %s3 = inlined_call_operand.vmem [shape: bf16[32,32], index: 3, kind: input, shape index: {}]
  %s4 = inlined_call_operand.vmem [shape: f32[1,32], index: 4, kind: input, shape index: {}]
  %s5 = inlined_call_operand.vmem [shape: f32[8,32], index: 5, kind: output, shape index: {}]
  %s6 = sld [smem:[#allocation0]]
  $region30: #{gtmp_forward.5} parent=0
    _
  %s8 = ssub.s32 1, %s6
  %s9 = scalar_select 0, %s8, %s6
  // Predicated region
  $region2: #{gtmp_forward.5} parent=0 // pred_check
    _
  $region3: #{gtmp_forward.5} parent=0 // pred_check_branch
    %11 = sbr.rel (0) target = $region5
  $region4: #{gtmp_forward.5} parent=0 // pred_region
    _
  $region5: #{gtmp_forward.5} parent=0 // pred_fallthru
    _
  // Predicated region
  $region6: #{gtmp_forward.5} parent=0 // pred_check
    _
  $region7: #{gtmp_forward.5} parent=0 // pred_check_branch
    %13 = sbr.rel (0) target = $region9
  $region8: #{gtmp_forward.5} parent=0 // pred_region
    _
  $region9: #{gtmp_forward.5} parent=0 // pred_fallthru
    _
  // Predicated region
  $region10: #{gtmp_forward.5} parent=0 // pred_check
    _
  $region11: #{gtmp_forward.5} parent=0 // pred_check_branch
    %15 = sbr.rel (0) target = $region13
  $region12: #{gtmp_forward.5} parent=0 // pred_region
    _
  $region13: #{gtmp_forward.5} parent=0 // pred_fallthru
    _
  // Predicated region
  $region14: #{gtmp_forward.5} parent=0 // pred_check
    _
  $region15: #{gtmp_forward.5} parent=0 // pred_check_branch
    %17 = sbr.rel (0) target = $region17
  $region16: #{gtmp_forward.5} parent=0 // pred_region
    _
  $region17: #{gtmp_forward.5} parent=0 // pred_fallthru
    _
  // Predicated region
  $region18: #{gtmp_forward.5} parent=0 // pred_check
    _
  $region19: #{gtmp_forward.5} parent=0 // pred_check_branch
    %19 = sbr.rel (0) target = $region21
  $region20: #{gtmp_forward.5} parent=0 // pred_region
    _
  $region21: #{gtmp_forward.5} parent=0 // pred_fallthru
    _
  %v21 = vld [vmem:[%s0] sm:$0xff]
  %v22 = vpack.c.bf16 %v21, %v21
  %v23 = vld [vmem:[%s1] sm:$0x3]
  %v24 = vld [vmem:[%s2] sm:$0x1]
  %v26 = vlaneseq
  %v27 = vshrl.u32 %v26, 7
  %v28 = vsub.s32 0, %v27
  %v29 = vrot.slane %v24, %v28
  %vm31 = vcmask 31744
  %v33 = vsel %vm31, %v22, 0
  %vm35 = vcmask 1041408
  %v37 = vsel %vm35, %v23, 0
  %39 = vmatprep.subr.bf16.mxu0 0
  %40 = vmatpush1.bf16.msra.mxu0 %v37
  %41 = vmatprep.subr.bf16.mxu0 0
  %42 = vmatpush1.bf16.msra.mxu0 0
  %43 = vmatprep.subr.bf16.mxu0 0
  %44 = vmatpush1.bf16.msra.mxu0 0
  %45 = vmatprep.subr.bf16.mxu0 0
  %46 = vmatpush1.bf16.msra.mxu0 0
  %47 = vmatprep.subr.bf16.mxu0 0
  %48 = vmatpush1.bf16.msra.mxu0 0
  %49 = vmatprep.subr.bf16.mxu0 0
  %50 = vmatpush1.bf16.msra.mxu0 0
  %51 = vmatprep.subr.bf16.mxu0 0
  %52 = vmatpush1.bf16.msra.mxu0 0
  %53 = vmatprep.subr.bf16.mxu0 0
  %54 = vmatpush1.bf16.msra.mxu0 0
  %55 = vmatprep.subr.bf16.mxu0 0
  %56 = vmatpush1.bf16.msra.mxu0 0
  %57 = vmatprep.subr.bf16.mxu0 0
  %58 = vmatpush1.bf16.msra.mxu0 0
  %59 = vmatprep.subr.bf16.mxu0 0
  %60 = vmatpush1.bf16.msra.mxu0 0
  %61 = vmatprep.subr.bf16.mxu0 0
  %62 = vmatpush1.bf16.msra.mxu0 0
  %63 = vmatprep.subr.bf16.mxu0 0
  %64 = vmatpush1.bf16.msra.mxu0 0
  %65 = vmatprep.subr.bf16.mxu0 0
  %66 = vmatpush1.bf16.msra.mxu0 0
  %67 = vmatprep.subr.bf16.mxu0 0
  %68 = vmatpush1.bf16.msra.mxu0 0
  %69 = vmatprep.subr.bf16.mxu0 0
  %70 = vmatpush1.bf16.msra.mxu0 0
  %71 = vmatprep.mubr.bf16.mxu0 0
  %72 = vmatmul.mubr.bf16.gmra.mrb[0].mxu0 %v33
  %v73 = vpop.f32.mrb[0].mxu0
  %v74 = vadd.f32 %v29, %v73
  %v75 = vpop.f32.mrb[0].mxu0
  %v76 = vpop.f32.mrb[0].mxu0
  %v77 = vpop.f32.mrb[0].mxu0
  %78 = vdwg.mxu0
  %v79 = vmax.f32 %v74, 0.0
  %v80 = vpack.c.bf16 %v79, %v79
  %v81 = vld [vmem:[%s3] sm:$0xf]
  %v82 = vld [vmem:[%s3 + $0x4] sm:$0xf]
  %v83 = vld [vmem:[%s3 + $0x8] sm:$0xf]
  %v84 = vld [vmem:[%s3 + $0xc] sm:$0xf]
  %v85 = vld [vmem:[%s4] sm:$0x1]
  %v87 = vlaneseq
  %v88 = vshrl.u32 %v87, 7
  %v89 = vsub.s32 0, %v88
  %v90 = vrot.slane %v85, %v89
  %v96 = vunpack.c.l.b16 %v81
  %v97 = vunpack.c.l.b16 %v82
  %v98 = vunpack.c.l.b16 %v83
  %v99 = vunpack.c.l.b16 %v84
  %v100 = vpack.c.b16 %v97, %v96
  %v101 = vpack.c.b16 %v99, %v98
  %vm104 = vcmask 261120
  %v106 = vsel %vm104, %v80, 0
  %108 = vmatprep.subr.bf16.mxu0 0
  %109 = vmatpush1.bf16.msra.mxu0 %v100
  %110 = vmatprep.subr.bf16.mxu0 0
  %111 = vmatpush1.bf16.msra.mxu0 %v101
  %112 = vmatprep.subr.bf16.mxu0 0
  %113 = vmatpush1.bf16.msra.mxu0 0
  %114 = vmatprep.subr.bf16.mxu0 0
  %115 = vmatpush1.bf16.msra.mxu0 0
  %116 = vmatprep.subr.bf16.mxu0 0
  %117 = vmatpush1.bf16.msra.mxu0 0
  %118 = vmatprep.subr.bf16.mxu0 0
  %119 = vmatpush1.bf16.msra.mxu0 0
  %120 = vmatprep.subr.bf16.mxu0 0
  %121 = vmatpush1.bf16.msra.mxu0 0
  %122 = vmatprep.subr.bf16.mxu0 0
  %123 = vmatpush1.bf16.msra.mxu0 0
  %124 = vmatprep.subr.bf16.mxu0 0
  %125 = vmatpush1.bf16.msra.mxu0 0
  %126 = vmatprep.subr.bf16.mxu0 0
  %127 = vmatpush1.bf16.msra.mxu0 0
  %128 = vmatprep.subr.bf16.mxu0 0
  %129 = vmatpush1.bf16.msra.mxu0 0
  %130 = vmatprep.subr.bf16.mxu0 0
  %131 = vmatpush1.bf16.msra.mxu0 0
  %132 = vmatprep.subr.bf16.mxu0 0
  %133 = vmatpush1.bf16.msra.mxu0 0
  %134 = vmatprep.subr.bf16.mxu0 0
  %135 = vmatpush1.bf16.msra.mxu0 0
  %136 = vmatprep.subr.bf16.mxu0 0
  %137 = vmatpush1.bf16.msra.mxu0 0
  %138 = vmatprep.subr.bf16.mxu0 0
  %139 = vmatpush1.bf16.msra.mxu0 0
  %140 = vmatprep.mubr.bf16.mxu0 0
  %141 = vmatmul.mubr.bf16.gmra.mrb[0].mxu0 %v106
  %v142 = vpop.f32.mrb[0].mxu0
  %v143 = vadd.f32 %v90, %v142
  %v144 = vpop.f32.mrb[0].mxu0
  %v145 = vpop.f32.mrb[0].mxu0
  %v146 = vpop.f32.mrb[0].mxu0
  %147 = vdwg.mxu0
  %148 = vst.msk [vmem:[%s5] sm:$0xff] %vm104, %v143
  // Predicated region
  $region22: #{gtmp_forward.5} parent=0 // pred_check
    _
  $region23: #{gtmp_forward.5} parent=0 // pred_check_branch
    %150 = sbr.rel (0) target = $region25
  $region24: #{gtmp_forward.5} parent=0 // pred_region
    _
  $region25: #{gtmp_forward.5} parent=0 // pred_fallthru
    _
  // Predicated region
  $region26: #{gtmp_forward.5} parent=0 // pred_check
    _
  $region27: #{gtmp_forward.5} parent=0 // pred_check_branch
    %152 = sbr.rel (0) target = $region29
  $region28: #{gtmp_forward.5} parent=0 // pred_region
    _
  $region29: #{gtmp_forward.5} parent=0 // pred_fallthru
    _

// kernel: gtmp_forward.9
$region0: #{gtmp_forward.9}
  #allocation0 [shape = 'u32[]', space=smem, size = 0x4, offset = 0x4, fixed_abs, tag = 'smem constant byte address 0x4 - core index']
  #allocation1 [shape = 'u32[144,128]{1,0:T(1,128)}', space=vmem, size = 0x12000, scoped, tag = 'internal scratch']
  #allocation2 [shape = 'f32[1,1]{1,0:T(1,128)S(1)}', space=vmem, size = 0x200, scoped, tag = 'scoped memory for gtmp_forward.9']
  %s0 = inlined_call_operand.vmem [shape: f32[8,32], index: 0, kind: input, shape index: {}]
  %s1 = inlined_call_operand.vmem [shape: bf16[32,16], index: 1, kind: input, shape index: {}]
  %s2 = inlined_call_operand.vmem [shape: f32[1,16], index: 2, kind: input, shape index: {}]
  %s3 = inlined_call_operand.vmem [shape: bf16[16,1], index: 3, kind: input, shape index: {}]
  %s4 = inlined_call_operand.<no memory space> [shape: f32[1,1], index: 4, kind: input, shape index: {}]
  %s5 = inlined_call_operand.vmem [shape: f32[8,1], index: 5, kind: output, shape index: {}]
  %s6 = sld [smem:[#allocation0]]
  $region30: #{gtmp_forward.9} parent=0
    _
  %s8 = ssub.s32 1, %s6
  %s9 = scalar_select 0, %s8, %s6
  %v10 = vstv %s4
  %11 = vst [vmem:[#allocation2] sm:$0x1] %v10
  // Predicated region
  $region2: #{gtmp_forward.9} parent=0 // pred_check
    _
  $region3: #{gtmp_forward.9} parent=0 // pred_check_branch
    %13 = sbr.rel (0) target = $region5
  $region4: #{gtmp_forward.9} parent=0 // pred_region
    _
  $region5: #{gtmp_forward.9} parent=0 // pred_fallthru
    _
  // Predicated region
  $region6: #{gtmp_forward.9} parent=0 // pred_check
    _
  $region7: #{gtmp_forward.9} parent=0 // pred_check_branch
    %15 = sbr.rel (0) target = $region9
  $region8: #{gtmp_forward.9} parent=0 // pred_region
    _
  $region9: #{gtmp_forward.9} parent=0 // pred_fallthru
    _
  // Predicated region
  $region10: #{gtmp_forward.9} parent=0 // pred_check
    _
  $region11: #{gtmp_forward.9} parent=0 // pred_check_branch
    %17 = sbr.rel (0) target = $region13
  $region12: #{gtmp_forward.9} parent=0 // pred_region
    _
  $region13: #{gtmp_forward.9} parent=0 // pred_fallthru
    _
  // Predicated region
  $region14: #{gtmp_forward.9} parent=0 // pred_check
    _
  $region15: #{gtmp_forward.9} parent=0 // pred_check_branch
    %19 = sbr.rel (0) target = $region17
  $region16: #{gtmp_forward.9} parent=0 // pred_region
    _
  $region17: #{gtmp_forward.9} parent=0 // pred_fallthru
    _
  // Predicated region
  $region18: #{gtmp_forward.9} parent=0 // pred_check
    _
  $region19: #{gtmp_forward.9} parent=0 // pred_check_branch
    %21 = sbr.rel (0) target = $region21
  $region20: #{gtmp_forward.9} parent=0 // pred_region
    _
  $region21: #{gtmp_forward.9} parent=0 // pred_fallthru
    _
  %v23 = vld [vmem:[%s0] sm:$0xff]
  %v24 = vpack.c.bf16 %v23, %v23
  %v25 = vld [vmem:[%s1] sm:$0xf]
  %v26 = vld [vmem:[%s1 + $0x4] sm:$0xf]
  %v27 = vld [vmem:[%s1 + $0x8] sm:$0xf]
  %v28 = vld [vmem:[%s1 + $0xc] sm:$0xf]
  %v29 = vld [vmem:[%s2] sm:$0x1]
  %v31 = vlaneseq
  %v32 = vshrl.u32 %v31, 7
  %v33 = vsub.s32 0, %v32
  %v34 = vrot.slane %v29, %v33
  %v40 = vunpack.c.l.b16 %v25
  %v41 = vunpack.c.l.b16 %v26
  %v42 = vunpack.c.l.b16 %v27
  %v43 = vunpack.c.l.b16 %v28
  %v44 = vpack.c.b16 %v41, %v40
  %v45 = vpack.c.b16 %v43, %v42
  %vm48 = vcmask 261120
  %v50 = vsel %vm48, %v24, 0
  %52 = vmatprep.subr.bf16.mxu0 0
  %53 = vmatpush1.bf16.msra.mxu0 %v44
  %54 = vmatprep.subr.bf16.mxu0 0
  %55 = vmatpush1.bf16.msra.mxu0 %v45
  %56 = vmatprep.subr.bf16.mxu0 0
  %57 = vmatpush1.bf16.msra.mxu0 0
  %58 = vmatprep.subr.bf16.mxu0 0
  %59 = vmatpush1.bf16.msra.mxu0 0
  %60 = vmatprep.subr.bf16.mxu0 0
  %61 = vmatpush1.bf16.msra.mxu0 0
  %62 = vmatprep.subr.bf16.mxu0 0
  %63 = vmatpush1.bf16.msra.mxu0 0
  %64 = vmatprep.subr.bf16.mxu0 0
  %65 = vmatpush1.bf16.msra.mxu0 0
  %66 = vmatprep.subr.bf16.mxu0 0
  %67 = vmatpush1.bf16.msra.mxu0 0
  %68 = vmatprep.subr.bf16.mxu0 0
  %69 = vmatpush1.bf16.msra.mxu0 0
  %70 = vmatprep.subr.bf16.mxu0 0
  %71 = vmatpush1.bf16.msra.mxu0 0
  %72 = vmatprep.subr.bf16.mxu0 0
  %73 = vmatpush1.bf16.msra.mxu0 0
  %74 = vmatprep.subr.bf16.mxu0 0
  %75 = vmatpush1.bf16.msra.mxu0 0
  %76 = vmatprep.subr.bf16.mxu0 0
  %77 = vmatpush1.bf16.msra.mxu0 0
  %78 = vmatprep.subr.bf16.mxu0 0
  %79 = vmatpush1.bf16.msra.mxu0 0
  %80 = vmatprep.subr.bf16.mxu0 0
  %81 = vmatpush1.bf16.msra.mxu0 0
  %82 = vmatprep.subr.bf16.mxu0 0
  %83 = vmatpush1.bf16.msra.mxu0 0
  %84 = vmatprep.mubr.bf16.mxu0 0
  %85 = vmatmul.mubr.bf16.gmra.mrb[0].mxu0 %v50
  %v86 = vpop.f32.mrb[0].mxu0
  %v87 = vadd.f32 %v34, %v86
  %v88 = vpop.f32.mrb[0].mxu0
  %v89 = vpop.f32.mrb[0].mxu0
  %v90 = vpop.f32.mrb[0].mxu0
  %91 = vdwg.mxu0
  %v92 = vmax.f32 %v87, 0.0
  %v93 = vpack.c.bf16 %v92, %v92
  %v94 = vld [vmem:[%s3] sm:$0xf]
  %v95 = vld [vmem:[%s3 + $0x4] sm:$0xf]
  %v96 = vld [vmem:[#allocation2] sm:$0x1]
  %v98 = vlaneseq
  %v99 = vshrl.u32 %v98, 7
  %v100 = vsub.s32 0, %v99
  %v101 = vrot.slane %v96, %v100
  %v105 = vunpack.c.l.b16 %v94
  %v106 = vunpack.c.l.b16 %v95
  %v107 = vpack.c.b16 %v106, %v105
  %vm109 = vcmask 130048
  %v111 = vsel %vm109, %v93, 0
  %113 = vmatprep.subr.bf16.mxu0 0
  %114 = vmatpush1.bf16.msra.mxu0 %v107
  %115 = vmatprep.subr.bf16.mxu0 0
  %116 = vmatpush1.bf16.msra.mxu0 0
  %117 = vmatprep.subr.bf16.mxu0 0
  %118 = vmatpush1.bf16.msra.mxu0 0
  %119 = vmatprep.subr.bf16.mxu0 0
  %120 = vmatpush1.bf16.msra.mxu0 0
  %121 = vmatprep.subr.bf16.mxu0 0
  %122 = vmatpush1.bf16.msra.mxu0 0
  %123 = vmatprep.subr.bf16.mxu0 0
  %124 = vmatpush1.bf16.msra.mxu0 0
  %125 = vmatprep.subr.bf16.mxu0 0
  %126 = vmatpush1.bf16.msra.mxu0 0
  %127 = vmatprep.subr.bf16.mxu0 0
  %128 = vmatpush1.bf16.msra.mxu0 0
  %129 = vmatprep.subr.bf16.mxu0 0
  %130 = vmatpush1.bf16.msra.mxu0 0
  %131 = vmatprep.subr.bf16.mxu0 0
  %132 = vmatpush1.bf16.msra.mxu0 0
  %133 = vmatprep.subr.bf16.mxu0 0
  %134 = vmatpush1.bf16.msra.mxu0 0
  %135 = vmatprep.subr.bf16.mxu0 0
  %136 = vmatpush1.bf16.msra.mxu0 0
  %137 = vmatprep.subr.bf16.mxu0 0
  %138 = vmatpush1.bf16.msra.mxu0 0
  %139 = vmatprep.subr.bf16.mxu0 0
  %140 = vmatpush1.bf16.msra.mxu0 0
  %141 = vmatprep.subr.bf16.mxu0 0
  %142 = vmatpush1.bf16.msra.mxu0 0
  %143 = vmatprep.subr.bf16.mxu0 0
  %144 = vmatpush1.bf16.msra.mxu0 0
  %145 = vmatprep.mubr.bf16.mxu0 0
  %146 = vmatmul.mubr.bf16.gmra.mrb[0].mxu0 %v111
  %v147 = vpop.f32.mrb[0].mxu0
  %v148 = vadd.f32 %v101, %v147
  %v149 = vpop.f32.mrb[0].mxu0
  %v150 = vpop.f32.mrb[0].mxu0
  %v151 = vpop.f32.mrb[0].mxu0
  %152 = vdwg.mxu0
  %vm153 = vcmask 7168
  %154 = vst.msk [vmem:[%s5] sm:$0xff] %vm153, %v148
  // Predicated region
  $region22: #{gtmp_forward.9} parent=0 // pred_check
    _
  $region23: #{gtmp_forward.9} parent=0 // pred_check_branch
    %156 = sbr.rel (0) target = $region25
  $region24: #{gtmp_forward.9} parent=0 // pred_region
    _
  $region25: #{gtmp_forward.9} parent=0 // pred_fallthru
    _
  // Predicated region
  $region26: #{gtmp_forward.9} parent=0 // pred_check
    _
  $region27: #{gtmp_forward.9} parent=0 // pred_check_branch
    %158 = sbr.rel (0) target = $region29
  $region28: #{gtmp_forward.9} parent=0 // pred_region
    _
  $region29: #{gtmp_forward.9} parent=0 // pred_fallthru
    _

// kernel: gtmp_forward.6
$region0: #{gtmp_forward.6}
  #allocation0 [shape = 'u32[]', space=smem, size = 0x4, offset = 0x4, fixed_abs, tag = 'smem constant byte address 0x4 - core index']
  #allocation1 [shape = 'u32[144,128]{1,0:T(1,128)}', space=vmem, size = 0x12000, scoped, tag = 'internal scratch']
  %s0 = inlined_call_operand.vmem [shape: f32[2,8,6], index: 0, kind: input, shape index: {}]
  %s1 = inlined_call_operand.vmem [shape: s32[2,8,4], index: 1, kind: input, shape index: {}]
  %s2 = inlined_call_operand.vmem [shape: s32[2,1,8], index: 2, kind: input, shape index: {}]
  %s3 = inlined_call_operand.vmem [shape: bf16[8,32], index: 3, kind: input, shape index: {}]
  %s4 = inlined_call_operand.vmem [shape: f32[6,256], index: 4, kind: input, shape index: {}]
  %s5 = inlined_call_operand.vmem [shape: f32[1,256], index: 5, kind: input, shape index: {}]
  %s6 = inlined_call_operand.vmem [shape: f32[1,256], index: 6, kind: input, shape index: {}]
  %s7 = inlined_call_operand.vmem [shape: bf16[256,96], index: 7, kind: input, shape index: {}]
  %s8 = inlined_call_operand.vmem [shape: f32[1,96], index: 8, kind: input, shape index: {}]
  %s9 = inlined_call_operand.vmem [shape: bf16[96,96], index: 9, kind: input, shape index: {}]
  %s10 = inlined_call_operand.vmem [shape: f32[1,96], index: 10, kind: input, shape index: {}]
  %s11 = inlined_call_operand.vmem [shape: bf16[224,128], index: 11, kind: input, shape index: {}]
  %s12 = inlined_call_operand.vmem [shape: f32[1,128], index: 12, kind: input, shape index: {}]
  %s13 = inlined_call_operand.vmem [shape: bf16[128,64], index: 13, kind: input, shape index: {}]
  %s14 = inlined_call_operand.vmem [shape: f32[1,64], index: 14, kind: input, shape index: {}]
  %s15 = inlined_call_operand.vmem [shape: bf16[64,32], index: 15, kind: input, shape index: {}]
  %s16 = inlined_call_operand.vmem [shape: f32[1,32], index: 16, kind: input, shape index: {}]
  %s17 = inlined_call_operand.vmem [shape: f32[2,8,32], index: 17, kind: output, shape index: {}]
  %s18 = sld [smem:[#allocation0]]
  $region105: #{gtmp_forward.6} parent=0
    _
  %s20 = ssub.s32 1, %s18
  %s21 = scalar_select 0, %s20, %s18
  loop: start=0, step=1, limit=4
  $region2: #{gtmp_forward.6} parent=0 // loop_pre_header
    _
  $region3: #{gtmp_forward.6} parent=0 // loop_header
    %s23 = sphi 0, %s27
    %p24 = scmp.ge.s32.totalorder %s23, 4
    %s30 = sphi 0, %s42
    %s31 = sphi 0, %s38
    %s32 = sphi 0, %s30
    %s33 = sphi 0, %s31
    %s34 = sphi 0, %s32
    %s35 = sphi 0, %s33
    %s47 = sphi 0, %s49
    %s50 = sphi 0, %s47
    %s51 = sphi 0, %s50
    %s67 = sphi 0, %s51
    %s75 = sphi 0, %s77
    %s78 = sphi 0, %s75
    %s79 = sphi 0, %s78
    %s95 = sphi 0, %s79
    %s103 = sphi 0, %s105
    %s106 = sphi 0, %s103
    %s107 = sphi 0, %s106
    %s123 = sphi 0, %s107
    %s127 = sphi 0, %s127
    %s129 = sphi 0, %s127
    %s130 = sphi 0, %s129
    %s144 = sphi 0, %s130
    %s148 = sphi 0, %s148
    %s150 = sphi 0, %s148
    %s151 = sphi 0, %s150
    %s165 = sphi 0, %s151
    %s169 = sphi 0, %s169
    %s171 = sphi 0, %s169
    %s172 = sphi 0, %s171
    %s186 = sphi 0, %s172
    %s190 = sphi 0, %s190
    %s192 = sphi 0, %s190
    %s193 = sphi 0, %s192
    %s207 = sphi 0, %s193
    %s211 = sphi 0, %s211
    %s213 = sphi 0, %s211
    %s214 = sphi 0, %s213
    %s228 = sphi 0, %s214
    %s232 = sphi 0, %s232
    %s234 = sphi 0, %s232
    %s235 = sphi 0, %s234
    %s249 = sphi 0, %s235
    %s253 = sphi 0, %s253
    %s255 = sphi 0, %s253
    %s256 = sphi 0, %s255
    %s270 = sphi 0, %s256
    %s274 = sphi 0, %s274
    %s276 = sphi 0, %s274
    %s277 = sphi 0, %s276
    %s291 = sphi 0, %s277
    %s295 = sphi 0, %s295
    %s297 = sphi 0, %s295
    %s298 = sphi 0, %s297
    %s312 = sphi 0, %s298
    %s316 = sphi 0, %s316
    %s318 = sphi 0, %s316
    %s319 = sphi 0, %s318
    %s333 = sphi 0, %s319
    %s337 = sphi 0, %s337
    %s339 = sphi 0, %s337
    %s340 = sphi 0, %s339
    %s354 = sphi 0, %s340
    %s358 = sphi 0, %s358
    %s360 = sphi 0, %s358
    %s361 = sphi 0, %s360
    %s375 = sphi 0, %s361
    %s379 = sphi 0, %s379
    %s381 = sphi 0, %s379
    %s382 = sphi 0, %s381
    %s396 = sphi 0, %s382
    %s400 = sphi 0, %s400
    %s402 = sphi 0, %s400
    %s403 = sphi 0, %s402
    %s417 = sphi 0, %s403
    %s423 = sphi 0, %s425
    %s426 = sphi 0, %s423
    %s427 = sphi 0, %s426
    %s443 = sphi 0, %s427
  $region4: #{gtmp_forward.6} parent=0 // loop_header_branch
    %26 = sbr.rel (%p24) target = $region8
  $region5: #{gtmp_forward.6} parent=0 // loop_body
    %s28 = ssub.s32 %s23, 1
    %s29 = ssub.s32 %s23, 2
    %s36 = sadd.s32 1, %s31
    %p37 = scmp.ge.s32.totalorder %s36, 1
    %s38 = scalar_select %p37, 0, %s36
    %s39 = sadd.s32 1, %s30
    %s40 = scalar_select %p37, %s39, %s30
    %p41 = scmp.ge.s32.totalorder %s40, 2
    %s42 = scalar_select %p41, 0, %s40
    %s43 = ssub.s32 %s30, %s42
    %s44 = ssub.s32 %s31, %s38
    %s45 = sor.u32 %s43, %s44
    %p46 = scmp.eq.s32.totalorder %s45, 0
    %s48 = sadd.s32 %s47, 1
    %s49 = scalar_select %p46, %s47, %s48
    %p52 = pneg %p46
    %p53 = scmp.eq.s32.totalorder %s23, 1
    %p54 = por %p52, %p53
    %p55 = scmp.ne.s32.totalorder %s47, %s50
    %p56 = scmp.eq.s32.totalorder %s23, 0
    %p57 = por %p55, %p56
    %p58 = scmp.ne.s32.totalorder %s47, %s50
    %p59 = scmp.eq.s32.totalorder %s28, 1
    %p60 = por %p58, %p59
    %p61 = scmp.ne.s32.totalorder %s50, %s51
    %p62 = scmp.eq.s32.totalorder %s28, 0
    %p63 = por %p61, %p62
    %p64 = scmp.ne.s32.totalorder %s50, %s51
    %p65 = scmp.eq.s32.totalorder %s29, 1
    %p66 = por %p64, %p65
    %p68 = scmp.ne.s32.totalorder %s51, %s67
    %p69 = scmp.eq.s32.totalorder %s29, 0
    %p70 = por %p68, %p69
    %s71 = ssub.s32 %s30, %s42
    %s72 = ssub.s32 %s31, %s38
    %s73 = sor.u32 %s71, %s72
    %p74 = scmp.eq.s32.totalorder %s73, 0
    %s76 = sadd.s32 %s75, 1
    %s77 = scalar_select %p74, %s75, %s76
    %p80 = pneg %p74
    %p81 = scmp.eq.s32.totalorder %s23, 1
    %p82 = por %p80, %p81
    %p83 = scmp.ne.s32.totalorder %s75, %s78
    %p84 = scmp.eq.s32.totalorder %s23, 0
    %p85 = por %p83, %p84
    %p86 = scmp.ne.s32.totalorder %s75, %s78
    %p87 = scmp.eq.s32.totalorder %s28, 1
    %p88 = por %p86, %p87
    %p89 = scmp.ne.s32.totalorder %s78, %s79
    %p90 = scmp.eq.s32.totalorder %s28, 0
    %p91 = por %p89, %p90
    %p92 = scmp.ne.s32.totalorder %s78, %s79
    %p93 = scmp.eq.s32.totalorder %s29, 1
    %p94 = por %p92, %p93
    %p96 = scmp.ne.s32.totalorder %s79, %s95
    %p97 = scmp.eq.s32.totalorder %s29, 0
    %p98 = por %p96, %p97
    %s99 = ssub.s32 %s30, %s42
    %s100 = ssub.s32 %s31, %s38
    %s101 = sor.u32 %s99, %s100
    %p102 = scmp.eq.s32.totalorder %s101, 0
    %s104 = sadd.s32 %s103, 1
    %s105 = scalar_select %p102, %s103, %s104
    %p108 = pneg %p102
    %p109 = scmp.eq.s32.totalorder %s23, 1
    %p110 = por %p108, %p109
    %p111 = scmp.ne.s32.totalorder %s103, %s106
    %p112 = scmp.eq.s32.totalorder %s23, 0
    %p113 = por %p111, %p112
    %p114 = scmp.ne.s32.totalorder %s103, %s106
    %p115 = scmp.eq.s32.totalorder %s28, 1
    %p116 = por %p114, %p115
    %p117 = scmp.ne.s32.totalorder %s106, %s107
    %p118 = scmp.eq.s32.totalorder %s28, 0
    %p119 = por %p117, %p118
    %p120 = scmp.ne.s32.totalorder %s106, %s107
    %p121 = scmp.eq.s32.totalorder %s29, 1
    %p122 = por %p120, %p121
    %p124 = scmp.ne.s32.totalorder %s107, %s123
    %p125 = scmp.eq.s32.totalorder %s29, 0
    %p126 = por %p124, %p125
    %s128 = sadd.s32 %s127, 1
    %p131 = scmp.eq.s32.totalorder %s23, 1
    %p132 = scmp.ne.s32.totalorder %s127, %s129
    %p133 = scmp.eq.s32.totalorder %s23, 0
    %p134 = por %p132, %p133
    %p135 = scmp.ne.s32.totalorder %s127, %s129
    %p136 = scmp.eq.s32.totalorder %s28, 1
    %p137 = por %p135, %p136
    %p138 = scmp.ne.s32.totalorder %s129, %s130
    %p139 = scmp.eq.s32.totalorder %s28, 0
    %p140 = por %p138, %p139
    %p141 = scmp.ne.s32.totalorder %s129, %s130
    %p142 = scmp.eq.s32.totalorder %s29, 1
    %p143 = por %p141, %p142
    %p145 = scmp.ne.s32.totalorder %s130, %s144
    %p146 = scmp.eq.s32.totalorder %s29, 0
    %p147 = por %p145, %p146
    %s149 = sadd.s32 %s148, 1
    %p152 = scmp.eq.s32.totalorder %s23, 1
    %p153 = scmp.ne.s32.totalorder %s148, %s150
    %p154 = scmp.eq.s32.totalorder %s23, 0
    %p155 = por %p153, %p154
    %p156 = scmp.ne.s32.totalorder %s148, %s150
    %p157 = scmp.eq.s32.totalorder %s28, 1
    %p158 = por %p156, %p157
    %p159 = scmp.ne.s32.totalorder %s150, %s151
    %p160 = scmp.eq.s32.totalorder %s28, 0
    %p161 = por %p159, %p160
    %p162 = scmp.ne.s32.totalorder %s150, %s151
    %p163 = scmp.eq.s32.totalorder %s29, 1
    %p164 = por %p162, %p163
    %p166 = scmp.ne.s32.totalorder %s151, %s165
    %p167 = scmp.eq.s32.totalorder %s29, 0
    %p168 = por %p166, %p167
    %s170 = sadd.s32 %s169, 1
    %p173 = scmp.eq.s32.totalorder %s23, 1
    %p174 = scmp.ne.s32.totalorder %s169, %s171
    %p175 = scmp.eq.s32.totalorder %s23, 0
    %p176 = por %p174, %p175
    %p177 = scmp.ne.s32.totalorder %s169, %s171
    %p178 = scmp.eq.s32.totalorder %s28, 1
    %p179 = por %p177, %p178
    %p180 = scmp.ne.s32.totalorder %s171, %s172
    %p181 = scmp.eq.s32.totalorder %s28, 0
    %p182 = por %p180, %p181
    %p183 = scmp.ne.s32.totalorder %s171, %s172
    %p184 = scmp.eq.s32.totalorder %s29, 1
    %p185 = por %p183, %p184
    %p187 = scmp.ne.s32.totalorder %s172, %s186
    %p188 = scmp.eq.s32.totalorder %s29, 0
    %p189 = por %p187, %p188
    %s191 = sadd.s32 %s190, 1
    %p194 = scmp.eq.s32.totalorder %s23, 1
    %p195 = scmp.ne.s32.totalorder %s190, %s192
    %p196 = scmp.eq.s32.totalorder %s23, 0
    %p197 = por %p195, %p196
    %p198 = scmp.ne.s32.totalorder %s190, %s192
    %p199 = scmp.eq.s32.totalorder %s28, 1
    %p200 = por %p198, %p199
    %p201 = scmp.ne.s32.totalorder %s192, %s193
    %p202 = scmp.eq.s32.totalorder %s28, 0
    %p203 = por %p201, %p202
    %p204 = scmp.ne.s32.totalorder %s192, %s193
    %p205 = scmp.eq.s32.totalorder %s29, 1
    %p206 = por %p204, %p205
    %p208 = scmp.ne.s32.totalorder %s193, %s207
    %p209 = scmp.eq.s32.totalorder %s29, 0
    %p210 = por %p208, %p209
    %s212 = sadd.s32 %s211, 1
    %p215 = scmp.eq.s32.totalorder %s23, 1
    %p216 = scmp.ne.s32.totalorder %s211, %s213
    %p217 = scmp.eq.s32.totalorder %s23, 0
    %p218 = por %p216, %p217
    %p219 = scmp.ne.s32.totalorder %s211, %s213
    %p220 = scmp.eq.s32.totalorder %s28, 1
    %p221 = por %p219, %p220
    %p222 = scmp.ne.s32.totalorder %s213, %s214
    %p223 = scmp.eq.s32.totalorder %s28, 0
    %p224 = por %p222, %p223
    %p225 = scmp.ne.s32.totalorder %s213, %s214
    %p226 = scmp.eq.s32.totalorder %s29, 1
    %p227 = por %p225, %p226
    %p229 = scmp.ne.s32.totalorder %s214, %s228
    %p230 = scmp.eq.s32.totalorder %s29, 0
    %p231 = por %p229, %p230
    %s233 = sadd.s32 %s232, 1
    %p236 = scmp.eq.s32.totalorder %s23, 1
    %p237 = scmp.ne.s32.totalorder %s232, %s234
    %p238 = scmp.eq.s32.totalorder %s23, 0
    %p239 = por %p237, %p238
    %p240 = scmp.ne.s32.totalorder %s232, %s234
    %p241 = scmp.eq.s32.totalorder %s28, 1
    %p242 = por %p240, %p241
    %p243 = scmp.ne.s32.totalorder %s234, %s235
    %p244 = scmp.eq.s32.totalorder %s28, 0
    %p245 = por %p243, %p244
    %p246 = scmp.ne.s32.totalorder %s234, %s235
    %p247 = scmp.eq.s32.totalorder %s29, 1
    %p248 = por %p246, %p247
    %p250 = scmp.ne.s32.totalorder %s235, %s249
    %p251 = scmp.eq.s32.totalorder %s29, 0
    %p252 = por %p250, %p251
    %s254 = sadd.s32 %s253, 1
    %p257 = scmp.eq.s32.totalorder %s23, 1
    %p258 = scmp.ne.s32.totalorder %s253, %s255
    %p259 = scmp.eq.s32.totalorder %s23, 0
    %p260 = por %p258, %p259
    %p261 = scmp.ne.s32.totalorder %s253, %s255
    %p262 = scmp.eq.s32.totalorder %s28, 1
    %p263 = por %p261, %p262
    %p264 = scmp.ne.s32.totalorder %s255, %s256
    %p265 = scmp.eq.s32.totalorder %s28, 0
    %p266 = por %p264, %p265
    %p267 = scmp.ne.s32.totalorder %s255, %s256
    %p268 = scmp.eq.s32.totalorder %s29, 1
    %p269 = por %p267, %p268
    %p271 = scmp.ne.s32.totalorder %s256, %s270
    %p272 = scmp.eq.s32.totalorder %s29, 0
    %p273 = por %p271, %p272
    %s275 = sadd.s32 %s274, 1
    %p278 = scmp.eq.s32.totalorder %s23, 1
    %p279 = scmp.ne.s32.totalorder %s274, %s276
    %p280 = scmp.eq.s32.totalorder %s23, 0
    %p281 = por %p279, %p280
    %p282 = scmp.ne.s32.totalorder %s274, %s276
    %p283 = scmp.eq.s32.totalorder %s28, 1
    %p284 = por %p282, %p283
    %p285 = scmp.ne.s32.totalorder %s276, %s277
    %p286 = scmp.eq.s32.totalorder %s28, 0
    %p287 = por %p285, %p286
    %p288 = scmp.ne.s32.totalorder %s276, %s277
    %p289 = scmp.eq.s32.totalorder %s29, 1
    %p290 = por %p288, %p289
    %p292 = scmp.ne.s32.totalorder %s277, %s291
    %p293 = scmp.eq.s32.totalorder %s29, 0
    %p294 = por %p292, %p293
    %s296 = sadd.s32 %s295, 1
    %p299 = scmp.eq.s32.totalorder %s23, 1
    %p300 = scmp.ne.s32.totalorder %s295, %s297
    %p301 = scmp.eq.s32.totalorder %s23, 0
    %p302 = por %p300, %p301
    %p303 = scmp.ne.s32.totalorder %s295, %s297
    %p304 = scmp.eq.s32.totalorder %s28, 1
    %p305 = por %p303, %p304
    %p306 = scmp.ne.s32.totalorder %s297, %s298
    %p307 = scmp.eq.s32.totalorder %s28, 0
    %p308 = por %p306, %p307
    %p309 = scmp.ne.s32.totalorder %s297, %s298
    %p310 = scmp.eq.s32.totalorder %s29, 1
    %p311 = por %p309, %p310
    %p313 = scmp.ne.s32.totalorder %s298, %s312
    %p314 = scmp.eq.s32.totalorder %s29, 0
    %p315 = por %p313, %p314
    %s317 = sadd.s32 %s316, 1
    %p320 = scmp.eq.s32.totalorder %s23, 1
    %p321 = scmp.ne.s32.totalorder %s316, %s318
    %p322 = scmp.eq.s32.totalorder %s23, 0
    %p323 = por %p321, %p322
    %p324 = scmp.ne.s32.totalorder %s316, %s318
    %p325 = scmp.eq.s32.totalorder %s28, 1
    %p326 = por %p324, %p325
    %p327 = scmp.ne.s32.totalorder %s318, %s319
    %p328 = scmp.eq.s32.totalorder %s28, 0
    %p329 = por %p327, %p328
    %p330 = scmp.ne.s32.totalorder %s318, %s319
    %p331 = scmp.eq.s32.totalorder %s29, 1
    %p332 = por %p330, %p331
    %p334 = scmp.ne.s32.totalorder %s319, %s333
    %p335 = scmp.eq.s32.totalorder %s29, 0
    %p336 = por %p334, %p335
    %s338 = sadd.s32 %s337, 1
    %p341 = scmp.eq.s32.totalorder %s23, 1
    %p342 = scmp.ne.s32.totalorder %s337, %s339
    %p343 = scmp.eq.s32.totalorder %s23, 0
    %p344 = por %p342, %p343
    %p345 = scmp.ne.s32.totalorder %s337, %s339
    %p346 = scmp.eq.s32.totalorder %s28, 1
    %p347 = por %p345, %p346
    %p348 = scmp.ne.s32.totalorder %s339, %s340
    %p349 = scmp.eq.s32.totalorder %s28, 0
    %p350 = por %p348, %p349
    %p351 = scmp.ne.s32.totalorder %s339, %s340
    %p352 = scmp.eq.s32.totalorder %s29, 1
    %p353 = por %p351, %p352
    %p355 = scmp.ne.s32.totalorder %s340, %s354
    %p356 = scmp.eq.s32.totalorder %s29, 0
    %p357 = por %p355, %p356
    %s359 = sadd.s32 %s358, 1
    %p362 = scmp.eq.s32.totalorder %s23, 1
    %p363 = scmp.ne.s32.totalorder %s358, %s360
    %p364 = scmp.eq.s32.totalorder %s23, 0
    %p365 = por %p363, %p364
    %p366 = scmp.ne.s32.totalorder %s358, %s360
    %p367 = scmp.eq.s32.totalorder %s28, 1
    %p368 = por %p366, %p367
    %p369 = scmp.ne.s32.totalorder %s360, %s361
    %p370 = scmp.eq.s32.totalorder %s28, 0
    %p371 = por %p369, %p370
    %p372 = scmp.ne.s32.totalorder %s360, %s361
    %p373 = scmp.eq.s32.totalorder %s29, 1
    %p374 = por %p372, %p373
    %p376 = scmp.ne.s32.totalorder %s361, %s375
    %p377 = scmp.eq.s32.totalorder %s29, 0
    %p378 = por %p376, %p377
    %s380 = sadd.s32 %s379, 1
    %p383 = scmp.eq.s32.totalorder %s23, 1
    %p384 = scmp.ne.s32.totalorder %s379, %s381
    %p385 = scmp.eq.s32.totalorder %s23, 0
    %p386 = por %p384, %p385
    %p387 = scmp.ne.s32.totalorder %s379, %s381
    %p388 = scmp.eq.s32.totalorder %s28, 1
    %p389 = por %p387, %p388
    %p390 = scmp.ne.s32.totalorder %s381, %s382
    %p391 = scmp.eq.s32.totalorder %s28, 0
    %p392 = por %p390, %p391
    %p393 = scmp.ne.s32.totalorder %s381, %s382
    %p394 = scmp.eq.s32.totalorder %s29, 1
    %p395 = por %p393, %p394
    %p397 = scmp.ne.s32.totalorder %s382, %s396
    %p398 = scmp.eq.s32.totalorder %s29, 0
    %p399 = por %p397, %p398
    %s401 = sadd.s32 %s400, 1
    %p404 = scmp.eq.s32.totalorder %s23, 1
    %p405 = scmp.ne.s32.totalorder %s400, %s402
    %p406 = scmp.eq.s32.totalorder %s23, 0
    %p407 = por %p405, %p406
    %p408 = scmp.ne.s32.totalorder %s400, %s402
    %p409 = scmp.eq.s32.totalorder %s28, 1
    %p410 = por %p408, %p409
    %p411 = scmp.ne.s32.totalorder %s402, %s403
    %p412 = scmp.eq.s32.totalorder %s28, 0
    %p413 = por %p411, %p412
    %p414 = scmp.ne.s32.totalorder %s402, %s403
    %p415 = scmp.eq.s32.totalorder %s29, 1
    %p416 = por %p414, %p415
    %p418 = scmp.ne.s32.totalorder %s403, %s417
    %p419 = scmp.eq.s32.totalorder %s29, 0
    %p420 = por %p418, %p419
    %s421 = ssub.s32 %s30, %s42
    %p422 = scmp.eq.s32.totalorder %s421, 0
    %s424 = sadd.s32 %s423, 1
    %s425 = scalar_select %p422, %s423, %s424
    %p428 = pneg %p422
    %p429 = scmp.eq.s32.totalorder %s23, 1
    %p430 = por %p428, %p429
    %p431 = scmp.ne.s32.totalorder %s423, %s426
    %p432 = scmp.eq.s32.totalorder %s23, 0
    %p433 = por %p431, %p432
    %p434 = scmp.ne.s32.totalorder %s423, %s426
    %p435 = scmp.eq.s32.totalorder %s28, 1
    %p436 = por %p434, %p435
    %p437 = scmp.ne.s32.totalorder %s426, %s427
    %p438 = scmp.eq.s32.totalorder %s28, 0
    %p439 = por %p437, %p438
    %p440 = scmp.ne.s32.totalorder %s426, %s427
    %p441 = scmp.eq.s32.totalorder %s29, 1
    %p442 = por %p440, %p441
    %p444 = scmp.ne.s32.totalorder %s427, %s443
    %p445 = scmp.eq.s32.totalorder %s29, 0
    %p446 = por %p444, %p445
    %p447 = scmp.le.s32.totalorder 1, %s23
    %p448 = scmp.lt.s32.totalorder %s23, 3
    %p449 = pnand %p447, %p448
    %p450 = pneg %p449
    // Predicated region
    $region9: #{gtmp_forward.6} parent=5 // pred_check
      _
    $region10: #{gtmp_forward.6} parent=5 // pred_check_branch
      %452 = sbr.rel (%p449) target = $region12
    $region11: #{gtmp_forward.6} parent=5 // pred_region
      %s453 = ssub.s32 %s23, 1
      // Predicated region
      $region13: #{gtmp_forward.6} parent=11 // pred_check
        %p454 = pneg %p140
      $region14: #{gtmp_forward.6} parent=11 // pred_check_branch
        %456 = sbr.rel (%p454) target = $region16
      $region15: #{gtmp_forward.6} parent=11 // pred_region
        _
      $region16: #{gtmp_forward.6} parent=11 // pred_fallthru
        _
      // Predicated region
      $region17: #{gtmp_forward.6} parent=11 // pred_check
        %p457 = pneg %p161
      $region18: #{gtmp_forward.6} parent=11 // pred_check_branch
        %459 = sbr.rel (%p457) target = $region20
      $region19: #{gtmp_forward.6} parent=11 // pred_region
        _
      $region20: #{gtmp_forward.6} parent=11 // pred_fallthru
        _
      // Predicated region
      $region21: #{gtmp_forward.6} parent=11 // pred_check
        %p460 = pneg %p182
      $region22: #{gtmp_forward.6} parent=11 // pred_check_branch
        %462 = sbr.rel (%p460) target = $region24
      $region23: #{gtmp_forward.6} parent=11 // pred_region
        _
      $region24: #{gtmp_forward.6} parent=11 // pred_fallthru
        _
      // Predicated region
      $region25: #{gtmp_forward.6} parent=11 // pred_check
        %p463 = pneg %p203
      $region26: #{gtmp_forward.6} parent=11 // pred_check_branch
        %465 = sbr.rel (%p463) target = $region28
      $region27: #{gtmp_forward.6} parent=11 // pred_region
        _
      $region28: #{gtmp_forward.6} parent=11 // pred_fallthru
        _
      // Predicated region
      $region29: #{gtmp_forward.6} parent=11 // pred_check
        %p466 = pneg %p224
      $region30: #{gtmp_forward.6} parent=11 // pred_check_branch
        %468 = sbr.rel (%p466) target = $region32
      $region31: #{gtmp_forward.6} parent=11 // pred_region
        _
      $region32: #{gtmp_forward.6} parent=11 // pred_fallthru
        _
      // Predicated region
      $region33: #{gtmp_forward.6} parent=11 // pred_check
        %p469 = pneg %p245
      $region34: #{gtmp_forward.6} parent=11 // pred_check_branch
        %471 = sbr.rel (%p469) target = $region36
      $region35: #{gtmp_forward.6} parent=11 // pred_region
        _
      $region36: #{gtmp_forward.6} parent=11 // pred_fallthru
        _
      // Predicated region
      $region37: #{gtmp_forward.6} parent=11 // pred_check
        %p472 = pneg %p266
      $region38: #{gtmp_forward.6} parent=11 // pred_check_branch
        %474 = sbr.rel (%p472) target = $region40
      $region39: #{gtmp_forward.6} parent=11 // pred_region
        _
      $region40: #{gtmp_forward.6} parent=11 // pred_fallthru
        _
      // Predicated region
      $region41: #{gtmp_forward.6} parent=11 // pred_check
        %p475 = pneg %p287
      $region42: #{gtmp_forward.6} parent=11 // pred_check_branch
        %477 = sbr.rel (%p475) target = $region44
      $region43: #{gtmp_forward.6} parent=11 // pred_region
        _
      $region44: #{gtmp_forward.6} parent=11 // pred_fallthru
        _
      // Predicated region
      $region45: #{gtmp_forward.6} parent=11 // pred_check
        %p478 = pneg %p308
      $region46: #{gtmp_forward.6} parent=11 // pred_check_branch
        %480 = sbr.rel (%p478) target = $region48
      $region47: #{gtmp_forward.6} parent=11 // pred_region
        _
      $region48: #{gtmp_forward.6} parent=11 // pred_fallthru
        _
      // Predicated region
      $region49: #{gtmp_forward.6} parent=11 // pred_check
        %p481 = pneg %p329
      $region50: #{gtmp_forward.6} parent=11 // pred_check_branch
        %483 = sbr.rel (%p481) target = $region52
      $region51: #{gtmp_forward.6} parent=11 // pred_region
        _
      $region52: #{gtmp_forward.6} parent=11 // pred_fallthru
        _
      // Predicated region
      $region53: #{gtmp_forward.6} parent=11 // pred_check
        %p484 = pneg %p350
      $region54: #{gtmp_forward.6} parent=11 // pred_check_branch
        %486 = sbr.rel (%p484) target = $region56
      $region55: #{gtmp_forward.6} parent=11 // pred_region
        _
      $region56: #{gtmp_forward.6} parent=11 // pred_fallthru
        _
      // Predicated region
      $region57: #{gtmp_forward.6} parent=11 // pred_check
        %p487 = pneg %p371
      $region58: #{gtmp_forward.6} parent=11 // pred_check_branch
        %489 = sbr.rel (%p487) target = $region60
      $region59: #{gtmp_forward.6} parent=11 // pred_region
        _
      $region60: #{gtmp_forward.6} parent=11 // pred_fallthru
        _
      // Predicated region
      $region61: #{gtmp_forward.6} parent=11 // pred_check
        %p490 = pneg %p392
      $region62: #{gtmp_forward.6} parent=11 // pred_check_branch
        %492 = sbr.rel (%p490) target = $region64
      $region63: #{gtmp_forward.6} parent=11 // pred_region
        _
      $region64: #{gtmp_forward.6} parent=11 // pred_fallthru
        _
      // Predicated region
      $region65: #{gtmp_forward.6} parent=11 // pred_check
        %p493 = pneg %p413
      $region66: #{gtmp_forward.6} parent=11 // pred_check_branch
        %495 = sbr.rel (%p493) target = $region68
      $region67: #{gtmp_forward.6} parent=11 // pred_region
        _
      $region68: #{gtmp_forward.6} parent=11 // pred_fallthru
        _
    $region12: #{gtmp_forward.6} parent=5 // pred_fallthru
      _
    %p496 = scmp.lt.s32.totalorder %s23, 2
    // Predicated region
    $region69: #{gtmp_forward.6} parent=5 // pred_check
      %p497 = pneg %p496
    $region70: #{gtmp_forward.6} parent=5 // pred_check_branch
      %499 = sbr.rel (%p497) target = $region72
    $region71: #{gtmp_forward.6} parent=5 // pred_region
      // Predicated region
      $region73: #{gtmp_forward.6} parent=71 // pred_check
        %p500 = pneg %p57
      $region74: #{gtmp_forward.6} parent=71 // pred_check_branch
        %502 = sbr.rel (%p500) target = $region76
      $region75: #{gtmp_forward.6} parent=71 // pred_region
        %p503 = scmp.lt.s32.totalorder %s30, 1
        %s504 = scalar_select %p503, %s30, 1
        %p505 = scmp.lt.s32.totalorder %s31, 0
        %s506 = scalar_select %p505, %s31, 0
        %s507 = sadd.s32 %s506, %s504
        %s508 = smul.addr %s507, 8
        %s509 = scalar_lea.vmem %s0, %s508
      $region76: #{gtmp_forward.6} parent=71 // pred_fallthru
        _
      // Predicated region
      $region77: #{gtmp_forward.6} parent=71 // pred_check
        %p510 = pneg %p85
      $region78: #{gtmp_forward.6} parent=71 // pred_check_branch
        %512 = sbr.rel (%p510) target = $region80
      $region79: #{gtmp_forward.6} parent=71 // pred_region
        %p513 = scmp.lt.s32.totalorder %s30, 1
        %s514 = scalar_select %p513, %s30, 1
        %p515 = scmp.lt.s32.totalorder %s31, 0
        %s516 = scalar_select %p515, %s31, 0
        %s517 = sadd.s32 %s516, %s514
        %s518 = smul.addr %s517, 8
        %s519 = scalar_lea.vmem %s1, %s518
      $region80: #{gtmp_forward.6} parent=71 // pred_fallthru
        _
      // Predicated region
      $region81: #{gtmp_forward.6} parent=71 // pred_check
        %p520 = pneg %p113
      $region82: #{gtmp_forward.6} parent=71 // pred_check_branch
        %522 = sbr.rel (%p520) target = $region84
      $region83: #{gtmp_forward.6} parent=71 // pred_region
        %p523 = scmp.lt.s32.totalorder %s30, 1
        %s524 = scalar_select %p523, %s30, 1
        %p525 = scmp.lt.s32.totalorder %s31, 0
        %s526 = scalar_select %p525, %s31, 0
        %s527 = sadd.s32 %s526, %s524
        %s528 = scalar_lea.vmem %s2, %s527
      $region84: #{gtmp_forward.6} parent=71 // pred_fallthru
        _
    $region72: #{gtmp_forward.6} parent=5 // pred_fallthru
      _
    %p529 = scmp.le.s32.totalorder 1, %s23
    %p530 = scmp.lt.s32.totalorder %s23, 3
    %p531 = pnand %p529, %p530
    %p532 = pneg %p531
    // Predicated region
    $region85: #{gtmp_forward.6} parent=5 // pred_check
      _
    $region86: #{gtmp_forward.6} parent=5 // pred_check_branch
      %534 = sbr.rel (%p531) target = $region88
    $region87: #{gtmp_forward.6} parent=5 // pred_region
      %s535 = ssub.s32 %s23, 1
      %p536 = scmp.lt.s32.totalorder %s32, 1
      %s537 = scalar_select %p536, %s32, 1
      %p538 = scmp.lt.s32.totalorder %s33, 0
      %s539 = scalar_select %p538, %s33, 0
      %s540 = sadd.s32 %s539, %s537
      %s541 = smul.addr %s540, 8
      %s542 = scalar_lea.vmem %s0, %s541
      %p543 = pneg %p63
      %p544 = pneg %p60
      %p545 = scmp.lt.s32.totalorder %s32, 1
      %s546 = scalar_select %p545, %s32, 1
      %p547 = scmp.lt.s32.totalorder %s33, 0
      %s548 = scalar_select %p547, %s33, 0
      %s549 = sadd.s32 %s548, %s546
      %s550 = smul.addr %s549, 8
      %s551 = scalar_lea.vmem %s1, %s550
      %p552 = pneg %p91
      %p553 = pneg %p88
      %p554 = scmp.lt.s32.totalorder %s32, 1
      %s555 = scalar_select %p554, %s32, 1
      %p556 = scmp.lt.s32.totalorder %s33, 0
      %s557 = scalar_select %p556, %s33, 0
      %s558 = sadd.s32 %s557, %s555
      %s559 = scalar_lea.vmem %s2, %s558
      %p560 = pneg %p119
      %p561 = pneg %p116
      %p562 = pneg %p140
      %p563 = pneg %p137
      %p564 = pneg %p161
      %p565 = pneg %p158
      %p566 = pneg %p182
      %p567 = pneg %p179
      %p568 = pneg %p203
      %p569 = pneg %p200
      %p570 = pneg %p224
      %p571 = pneg %p221
      %p572 = pneg %p245
      %p573 = pneg %p242
      %p574 = pneg %p266
      %p575 = pneg %p263
      %p576 = pneg %p287
      %p577 = pneg %p284
      %p578 = pneg %p308
      %p579 = pneg %p305
      %p580 = pneg %p329
      %p581 = pneg %p326
      %p582 = pneg %p350
      %p583 = pneg %p347
      %p584 = pneg %p371
      %p585 = pneg %p368
      %p586 = pneg %p392
      %p587 = pneg %p389
      %p588 = pneg %p413
      %p589 = pneg %p410
      %p590 = pneg %p439
      %p591 = pneg %p436
      %p592 = scmp.lt.s32.totalorder %s32, 1
      %s593 = scalar_select %p592, %s32, 1
      %s594 = smul.addr %s593, 8
      %s595 = scalar_lea.vmem %s17, %s594
      %p596 = scmp.lt.s32.totalorder %s32, 1
      %s597 = scalar_select %p596, %s32, 1
      %p598 = scmp.lt.s32.totalorder %s33, 0
      %s599 = scalar_select %p598, %s33, 0
      %s600 = sadd.s32 %s599, %s597
      %s601 = smul.addr %s600, 8
      %s602 = scalar_lea.vmem %s0, %s601
      %p603 = scmp.lt.s32.totalorder %s32, 1
      %s604 = scalar_select %p603, %s32, 1
      %p605 = scmp.lt.s32.totalorder %s33, 0
      %s606 = scalar_select %p605, %s33, 0
      %s607 = sadd.s32 %s606, %s604
      %s608 = smul.addr %s607, 8
      %s609 = scalar_lea.vmem %s1, %s608
      %p610 = scmp.lt.s32.totalorder %s32, 1
      %s611 = scalar_select %p610, %s32, 1
      %p612 = scmp.lt.s32.totalorder %s33, 0
      %s613 = scalar_select %p612, %s33, 0
      %s614 = sadd.s32 %s613, %s611
      %s615 = scalar_lea.vmem %s2, %s614
      %p616 = scmp.lt.s32.totalorder %s32, 1
      %s617 = scalar_select %p616, %s32, 1
      %s618 = smul.addr %s617, 8
      %s619 = scalar_lea.vmem %s17, %s618
      %p621 = scmp.eq.s32.totalorder %s33, 0
      // Predicated region
      $region89: #{gtmp_forward.6} parent=87 // pred_check
        %p622 = pneg %p621
      $region90: #{gtmp_forward.6} parent=87 // pred_check_branch
        %624 = sbr.rel (%p622) target = $region92
      $region91: #{gtmp_forward.6} parent=87 // pred_region
        %vm625 = vcmask 261120
        %626 = vst.msk [vmem:[%s619] sm:$0xff] %vm625, 0.0
      $region92: #{gtmp_forward.6} parent=87 // pred_fallthru
        _
      %v627 = vld [vmem:[%s602] sm:$0xff]
      %v628 = vld [vmem:[%s4] sm:$0x3f]
      %v629 = vld [vmem:[%s4 + $0x8] sm:$0x3f]
      %vm630 = vcmask 48128
      %v632 = vsel %vm630, %v627, 0
      %vm634 = vcmask 1045504
      %v636 = vsel %vm634, %v628, 0
      %v639 = vsel %vm634, %v629, 0
      %641 = vmatprep.subr.mxu0 %v639
      %642 = vmatpush1.msra.mxu0 %v636
      %643 = vmatprep.subr.mxu0 0.0
      %644 = vmatpush1.msra.mxu0 0.0
      %645 = vmatprep.subr.mxu0 0.0
      %646 = vmatpush1.msra.mxu0 0.0
      %647 = vmatprep.subr.mxu0 0.0
      %648 = vmatpush1.msra.mxu0 0.0
      %649 = vmatprep.subr.mxu0 0.0
      %650 = vmatpush1.msra.mxu0 0.0
      %651 = vmatprep.subr.mxu0 0.0
      %652 = vmatpush1.msra.mxu0 0.0
      %653 = vmatprep.subr.mxu0 0.0
      %654 = vmatpush1.msra.mxu0 0.0
      %655 = vmatprep.subr.mxu0 0.0
      %656 = vmatpush1.msra.mxu0 0.0
      %657 = vmatprep.subr.mxu0 0.0
      %658 = vmatpush1.msra.mxu0 0.0
      %659 = vmatprep.subr.mxu0 0.0
      %660 = vmatpush1.msra.mxu0 0.0
      %661 = vmatprep.subr.mxu0 0.0
      %662 = vmatpush1.msra.mxu0 0.0
      %663 = vmatprep.subr.mxu0 0.0
      %664 = vmatpush1.msra.mxu0 0.0
      %665 = vmatprep.subr.mxu0 0.0
      %666 = vmatpush1.msra.mxu0 0.0
      %667 = vmatprep.subr.mxu0 0.0
      %668 = vmatpush1.msra.mxu0 0.0
      %669 = vmatprep.subr.mxu0 0.0
      %670 = vmatpush1.msra.mxu0 0.0
      %671 = vmatprep.subr.mxu0 0.0
      %672 = vmatpush1.msra.mxu0 0.0
      %673 = vmatprep.subr.mxu0 0.0
      %674 = vmatpush1.msra.mxu0 0.0
      %675 = vmatprep.subr.mxu0 0.0
      %676 = vmatpush1.msra.mxu0 0.0
      %677 = vmatprep.subr.mxu0 0.0
      %678 = vmatpush1.msra.mxu0 0.0
      %679 = vmatprep.subr.mxu0 0.0
      %680 = vmatpush1.msra.mxu0 0.0
      %681 = vmatprep.subr.mxu0 0.0
      %682 = vmatpush1.msra.mxu0 0.0
      %683 = vmatprep.subr.mxu0 0.0
      %684 = vmatpush1.msra.mxu0 0.0
      %685 = vmatprep.subr.mxu0 0.0
      %686 = vmatpush1.msra.mxu0 0.0
      %687 = vmatprep.subr.mxu0 0.0
      %688 = vmatpush1.msra.mxu0 0.0
      %689 = vmatprep.subr.mxu0 0.0
      %690 = vmatpush1.msra.mxu0 0.0
      %691 = vmatprep.subr.mxu0 0.0
      %692 = vmatpush1.msra.mxu0 0.0
      %693 = vmatprep.subr.mxu0 0.0
      %694 = vmatpush1.msra.mxu0 0.0
      %695 = vmatprep.subr.mxu0 0.0
      %696 = vmatpush1.msra.mxu0 0.0
      %697 = vmatprep.subr.mxu0 0.0
      %698 = vmatpush1.msra.mxu0 0.0
      %699 = vmatprep.subr.mxu0 0.0
      %700 = vmatpush1.msra.mxu0 0.0
      %701 = vmatprep.subr.mxu0 0.0
      %702 = vmatpush1.msra.mxu0 0.0
      %703 = vmatprep.subr.mxu0 0.0
      %704 = vmatpush1.msra.mxu0 0.0
      %705 = vmatprep.mubr.f32.mxu0 0.0
      %706 = vmatmul.mubr.f32.gmra.mrb[0].mxu0 %v632
      %v707 = vpop.f32.mrb[0].mxu0
      %v708 = vadd.f32 0.0, %v707
      %v709 = vpop.f32.mrb[0].mxu0
      %v710 = vadd.f32 0.0, %v709
      %711 = vdwg.mxu0
      %v712 = vld [vmem:[%s5] sm:$0x3]
      %v714 = vlaneseq
      %v715 = vshrl.u32 %v714, 7
      %v716 = vsub.s32 0, %v715
      %v717 = vrot.slane %v712, %v716
      %v718 = vlaneseq
      %v719 = vshrl.u32 %v718, 7
      %v720 = vsub.s32 1, %v719
      %v721 = vrot.slane %v712, %v720
      %v724 = vsub.f32 %v708, %v717
      %v725 = vsub.f32 %v710, %v721
      %v726 = vld [vmem:[%s6] sm:$0x3]
      %v728 = vlaneseq
      %v729 = vshrl.u32 %v728, 7
      %v730 = vsub.s32 0, %v729
      %v731 = vrot.slane %v726, %v730
      %v732 = vlaneseq
      %v733 = vshrl.u32 %v732, 7
      %v734 = vsub.s32 1, %v733
      %v735 = vrot.slane %v726, %v734
      %v738 = vmul.f32 %v731, %v724
      %v739 = vmul.f32 %v735, %v725
      %v740 = vmul.f32 %v738, %v724
      %v741 = vmul.f32 %v739, %v725
      %v742 = vmul.f32 %v740, 1.442695
      %v743 = vpow.pop %v742
      %v744 = vmul.f32 %v741, 1.442695
      %v745 = vpow.pop %v744
      %v746 = vpack.c.bf16 %v743, %v743
      %v747 = vpack.c.bf16 %v745, %v745
      %v748 = vld [vmem:[%s7] sm:$0xf]
      %v749 = vld [vmem:[%s7 + $0x4] sm:$0xf]
      %v750 = vld [vmem:[%s7 + $0x8] sm:$0xf]
      %v751 = vld [vmem:[%s7 + $0xc] sm:$0xf]
      %v752 = vld [vmem:[%s7 + $0x10] sm:$0xf]
      %v753 = vld [vmem:[%s7 + $0x14] sm:$0xf]
      %v754 = vld [vmem:[%s7 + $0x18] sm:$0xf]
      %v755 = vld [vmem:[%s7 + $0x1c] sm:$0xf]
      %v756 = vld [vmem:[%s7 + $0x20] sm:$0xf]
      %v757 = vld [vmem:[%s7 + $0x24] sm:$0xf]
      %v758 = vld [vmem:[%s7 + $0x28] sm:$0xf]
      %v759 = vld [vmem:[%s7 + $0x2c] sm:$0xf]
      %v760 = vld [vmem:[%s7 + $0x30] sm:$0xf]
      %v761 = vld [vmem:[%s7 + $0x34] sm:$0xf]
      %v762 = vld [vmem:[%s7 + $0x38] sm:$0xf]
      %v763 = vld [vmem:[%s7 + $0x3c] sm:$0xf]
      %v764 = vld [vmem:[%s7 + $0x40] sm:$0xf]
      %v765 = vld [vmem:[%s7 + $0x44] sm:$0xf]
      %v766 = vld [vmem:[%s7 + $0x48] sm:$0xf]
      %v767 = vld [vmem:[%s7 + $0x4c] sm:$0xf]
      %v768 = vld [vmem:[%s7 + $0x50] sm:$0xf]
      %v769 = vld [vmem:[%s7 + $0x54] sm:$0xf]
      %v770 = vld [vmem:[%s7 + $0x58] sm:$0xf]
      %v771 = vld [vmem:[%s7 + $0x5c] sm:$0xf]
      %v772 = vld [vmem:[%s7 + $0x60] sm:$0xf]
      %v773 = vld [vmem:[%s7 + $0x64] sm:$0xf]
      %v774 = vld [vmem:[%s7 + $0x68] sm:$0xf]
      %v775 = vld [vmem:[%s7 + $0x6c] sm:$0xf]
      %v776 = vld [vmem:[%s7 + $0x70] sm:$0xf]
      %v777 = vld [vmem:[%s7 + $0x74] sm:$0xf]
      %v778 = vld [vmem:[%s7 + $0x78] sm:$0xf]
      %v779 = vld [vmem:[%s7 + $0x7c] sm:$0xf]
      %v780 = vld [vmem:[%s8] sm:$0x1]
      %v782 = vlaneseq
      %v783 = vshrl.u32 %v782, 7
      %v784 = vsub.s32 0, %v783
      %v785 = vrot.slane %v780, %v784
      %v819 = vunpack.c.l.b16 %v748
      %v820 = vunpack.c.l.b16 %v749
      %v821 = vunpack.c.l.b16 %v750
      %v822 = vunpack.c.l.b16 %v751
      %v823 = vunpack.c.l.b16 %v752
      %v824 = vunpack.c.l.b16 %v753
      %v825 = vunpack.c.l.b16 %v754
      %v826 = vunpack.c.l.b16 %v755
      %v827 = vunpack.c.l.b16 %v756
      %v828 = vunpack.c.l.b16 %v757
      %v829 = vunpack.c.l.b16 %v758
      %v830 = vunpack.c.l.b16 %v759
      %v831 = vunpack.c.l.b16 %v760
      %v832 = vunpack.c.l.b16 %v761
      %v833 = vunpack.c.l.b16 %v762
      %v834 = vunpack.c.l.b16 %v763
      %v835 = vunpack.c.l.b16 %v764
      %v836 = vunpack.c.l.b16 %v765
      %v837 = vunpack.c.l.b16 %v766
      %v838 = vunpack.c.l.b16 %v767
      %v839 = vunpack.c.l.b16 %v768
      %v840 = vunpack.c.l.b16 %v769
      %v841 = vunpack.c.l.b16 %v770
      %v842 = vunpack.c.l.b16 %v771
      %v843 = vunpack.c.l.b16 %v772
      %v844 = vunpack.c.l.b16 %v773
      %v845 = vunpack.c.l.b16 %v774
      %v846 = vunpack.c.l.b16 %v775
      %v847 = vunpack.c.l.b16 %v776
      %v848 = vunpack.c.l.b16 %v777
      %v849 = vunpack.c.l.b16 %v778
      %v850 = vunpack.c.l.b16 %v779
      %v851 = vpack.c.b16 %v820, %v819
      %v852 = vpack.c.b16 %v822, %v821
      %v853 = vpack.c.b16 %v824, %v823
      %v854 = vpack.c.b16 %v826, %v825
      %v855 = vpack.c.b16 %v828, %v827
      %v856 = vpack.c.b16 %v830, %v829
      %v857 = vpack.c.b16 %v832, %v831
      %v858 = vpack.c.b16 %v834, %v833
      %v859 = vpack.c.b16 %v836, %v835
      %v860 = vpack.c.b16 %v838, %v837
      %v861 = vpack.c.b16 %v840, %v839
      %v862 = vpack.c.b16 %v842, %v841
      %v863 = vpack.c.b16 %v844, %v843
      %v864 = vpack.c.b16 %v846, %v845
      %v865 = vpack.c.b16 %v848, %v847
      %v866 = vpack.c.b16 %v850, %v849
      %883 = vmatprep.subr.bf16.mxu0 0
      %884 = vmatpush1.bf16.msra.mxu0 %v851
      %885 = vmatprep.subr.bf16.mxu0 0
      %886 = vmatpush1.bf16.msra.mxu0 %v852
      %887 = vmatprep.subr.bf16.mxu0 0
      %888 = vmatpush1.bf16.msra.mxu0 %v853
      %889 = vmatprep.subr.bf16.mxu0 0
      %890 = vmatpush1.bf16.msra.mxu0 %v854
      %891 = vmatprep.subr.bf16.mxu0 0
      %892 = vmatpush1.bf16.msra.mxu0 %v855
      %893 = vmatprep.subr.bf16.mxu0 0
      %894 = vmatpush1.bf16.msra.mxu0 %v856
      %895 = vmatprep.subr.bf16.mxu0 0
      %896 = vmatpush1.bf16.msra.mxu0 %v857
      %897 = vmatprep.subr.bf16.mxu0 0
      %898 = vmatpush1.bf16.msra.mxu0 %v858
      %899 = vmatprep.subr.bf16.mxu0 0
      %900 = vmatpush1.bf16.msra.mxu0 %v859
      %901 = vmatprep.subr.bf16.mxu0 0
      %902 = vmatpush1.bf16.msra.mxu0 %v860
      %903 = vmatprep.subr.bf16.mxu0 0
      %904 = vmatpush1.bf16.msra.mxu0 %v861
      %905 = vmatprep.subr.bf16.mxu0 0
      %906 = vmatpush1.bf16.msra.mxu0 %v862
      %907 = vmatprep.subr.bf16.mxu0 0
      %908 = vmatpush1.bf16.msra.mxu0 %v863
      %909 = vmatprep.subr.bf16.mxu0 0
      %910 = vmatpush1.bf16.msra.mxu0 %v864
      %911 = vmatprep.subr.bf16.mxu0 0
      %912 = vmatpush1.bf16.msra.mxu0 %v865
      %913 = vmatprep.subr.bf16.mxu0 0
      %914 = vmatpush1.bf16.msra.mxu0 %v866
      %915 = vmatprep.mubr.bf16.mxu0 %v747
      %916 = vmatmul.mubr.bf16.gmra.mrb[0].mxu0 %v746
      %v917 = vpop.f32.mrb[0].mxu0
      %v918 = vadd.f32 %v785, %v917
      %v919 = vpop.f32.mrb[0].mxu0
      %v920 = vpop.f32.mrb[0].mxu0
      %v921 = vpop.f32.mrb[0].mxu0
      %922 = vdwg.mxu0
      %v923 = vmax.f32 %v918, 0.0
      %v924 = vpack.c.bf16 %v923, %v923
      %v925 = vld [vmem:[%s9] sm:$0xf]
      %v926 = vld [vmem:[%s9 + $0x4] sm:$0xf]
      %v927 = vld [vmem:[%s9 + $0x8] sm:$0xf]
      %v928 = vld [vmem:[%s9 + $0xc] sm:$0xf]
      %v929 = vld [vmem:[%s9 + $0x10] sm:$0xf]
      %v930 = vld [vmem:[%s9 + $0x14] sm:$0xf]
      %v931 = vld [vmem:[%s9 + $0x18] sm:$0xf]
      %v932 = vld [vmem:[%s9 + $0x1c] sm:$0xf]
      %v933 = vld [vmem:[%s9 + $0x20] sm:$0xf]
      %v934 = vld [vmem:[%s9 + $0x24] sm:$0xf]
      %v935 = vld [vmem:[%s9 + $0x28] sm:$0xf]
      %v936 = vld [vmem:[%s9 + $0x2c] sm:$0xf]
      %v937 = vld [vmem:[%s10] sm:$0x1]
      %v939 = vlaneseq
      %v940 = vshrl.u32 %v939, 7
      %v941 = vsub.s32 0, %v940
      %v942 = vrot.slane %v937, %v941
      %v956 = vunpack.c.l.b16 %v925
      %v957 = vunpack.c.l.b16 %v926
      %v958 = vunpack.c.l.b16 %v927
      %v959 = vunpack.c.l.b16 %v928
      %v960 = vunpack.c.l.b16 %v929
      %v961 = vunpack.c.l.b16 %v930
      %v962 = vunpack.c.l.b16 %v931
      %v963 = vunpack.c.l.b16 %v932
      %v964 = vunpack.c.l.b16 %v933
      %v965 = vunpack.c.l.b16 %v934
      %v966 = vunpack.c.l.b16 %v935
      %v967 = vunpack.c.l.b16 %v936
      %v968 = vpack.c.b16 %v957, %v956
      %v969 = vpack.c.b16 %v959, %v958
      %v970 = vpack.c.b16 %v961, %v960
      %v971 = vpack.c.b16 %v963, %v962
      %v972 = vpack.c.b16 %v965, %v964
      %v973 = vpack.c.b16 %v967, %v966
      %vm980 = vcmask 785408
      %v982 = vsel %vm980, %v924, 0
      %984 = vmatprep.subr.bf16.mxu0 0
      %985 = vmatpush1.bf16.msra.mxu0 %v968
      %986 = vmatprep.subr.bf16.mxu0 0
      %987 = vmatpush1.bf16.msra.mxu0 %v969
      %988 = vmatprep.subr.bf16.mxu0 0
      %989 = vmatpush1.bf16.msra.mxu0 %v970
      %990 = vmatprep.subr.bf16.mxu0 0
      %991 = vmatpush1.bf16.msra.mxu0 %v971
      %992 = vmatprep.subr.bf16.mxu0 0
      %993 = vmatpush1.bf16.msra.mxu0 %v972
      %994 = vmatprep.subr.bf16.mxu0 0
      %995 = vmatpush1.bf16.msra.mxu0 %v973
      %996 = vmatprep.subr.bf16.mxu0 0
      %997 = vmatpush1.bf16.msra.mxu0 0
      %998 = vmatprep.subr.bf16.mxu0 0
      %999 = vmatpush1.bf16.msra.mxu0 0
      %1000 = vmatprep.subr.bf16.mxu0 0
      %1001 = vmatpush1.bf16.msra.mxu0 0
      %1002 = vmatprep.subr.bf16.mxu0 0
      %1003 = vmatpush1.bf16.msra.mxu0 0
      %1004 = vmatprep.subr.bf16.mxu0 0
      %1005 = vmatpush1.bf16.msra.mxu0 0
      %1006 = vmatprep.subr.bf16.mxu0 0
      %1007 = vmatpush1.bf16.msra.mxu0 0
      %1008 = vmatprep.subr.bf16.mxu0 0
      %1009 = vmatpush1.bf16.msra.mxu0 0
      %1010 = vmatprep.subr.bf16.mxu0 0
      %1011 = vmatpush1.bf16.msra.mxu0 0
      %1012 = vmatprep.subr.bf16.mxu0 0
      %1013 = vmatpush1.bf16.msra.mxu0 0
      %1014 = vmatprep.subr.bf16.mxu0 0
      %1015 = vmatpush1.bf16.msra.mxu0 0
      %1016 = vmatprep.mubr.bf16.mxu0 0
      %1017 = vmatmul.mubr.bf16.gmra.mrb[0].mxu0 %v982
      %v1018 = vpop.f32.mrb[0].mxu0
      %v1019 = vadd.f32 %v942, %v1018
      %v1020 = vpop.f32.mrb[0].mxu0
      %v1021 = vpop.f32.mrb[0].mxu0
      %v1022 = vpop.f32.mrb[0].mxu0
      %1023 = vdwg.mxu0
      %v1024 = vld [vmem:[%s609] sm:$0xff]
      %v1025 = vld [vmem:[%s3] sm:$0xf]
      %v1026 = vlaneseq
      %v1027 = vand.u32 %v1026, 127
      %1028 = vset.pattern.permute.xlu0 0
      %1029 = vperm.xlu0 %1028, %v1024
      %v1030 = vpop.permute.xlu0 %1029
      %vm1031 = vcmp.eq.s32.totalorder %v1027, %v1030
      %v1032 = vsel %vm1031, 1, 0
      %v1033 = vcvt.s32.f32 %v1032
      %v1034 = vpack.c.bf16 %v1033, %v1033
      %vm1035 = vcmask 64512
      %v1037 = vsel %vm1035, %v1034, 0
      %vm1039 = vcmask 1043456
      %v1041 = vsel %vm1039, %v1025, 0
      %1043 = vmatprep.subr.bf16.mxu0 0
      %1044 = vmatpush1.bf16.msra.mxu0 %v1041
      %1045 = vmatprep.subr.bf16.mxu0 0
      %1046 = vmatpush1.bf16.msra.mxu0 0
      %1047 = vmatprep.subr.bf16.mxu0 0
      %1048 = vmatpush1.bf16.msra.mxu0 0
      %1049 = vmatprep.subr.bf16.mxu0 0
      %1050 = vmatpush1.bf16.msra.mxu0 0
      %1051 = vmatprep.subr.bf16.mxu0 0
      %1052 = vmatpush1.bf16.msra.mxu0 0
      %1053 = vmatprep.subr.bf16.mxu0 0
      %1054 = vmatpush1.bf16.msra.mxu0 0
      %1055 = vmatprep.subr.bf16.mxu0 0
      %1056 = vmatpush1.bf16.msra.mxu0 0
      %1057 = vmatprep.subr.bf16.mxu0 0
      %1058 = vmatpush1.bf16.msra.mxu0 0
      %1059 = vmatprep.subr.bf16.mxu0 0
      %1060 = vmatpush1.bf16.msra.mxu0 0
      %1061 = vmatprep.subr.bf16.mxu0 0
      %1062 = vmatpush1.bf16.msra.mxu0 0
      %1063 = vmatprep.subr.bf16.mxu0 0
      %1064 = vmatpush1.bf16.msra.mxu0 0
      %1065 = vmatprep.subr.bf16.mxu0 0
      %1066 = vmatpush1.bf16.msra.mxu0 0
      %1067 = vmatprep.subr.bf16.mxu0 0
      %1068 = vmatpush1.bf16.msra.mxu0 0
      %1069 = vmatprep.subr.bf16.mxu0 0
      %1070 = vmatpush1.bf16.msra.mxu0 0
      %1071 = vmatprep.subr.bf16.mxu0 0
      %1072 = vmatpush1.bf16.msra.mxu0 0
      %1073 = vmatprep.subr.bf16.mxu0 0
      %1074 = vmatpush1.bf16.msra.mxu0 0
      %1075 = vmatprep.mubr.bf16.mxu0 0
      %1076 = vmatmul.mubr.bf16.gmra.mrb[0].mxu0 %v1037
      %v1077 = vpop.f32.mrb[0].mxu0
      %v1078 = vadd.f32 0.0, %v1077
      %v1079 = vpop.f32.mrb[0].mxu0
      %v1080 = vpop.f32.mrb[0].mxu0
      %v1081 = vpop.f32.mrb[0].mxu0
      %1082 = vdwg.mxu0
      %1083 = vset.pattern.permute.xlu0 1
      %1084 = vperm.xlu0 %1083, %v1024
      %v1085 = vpop.permute.xlu0 %1084
      %vm1086 = vcmp.eq.s32.totalorder %v1027, %v1085
      %v1087 = vsel %vm1086, 1, 0
      %v1088 = vcvt.s32.f32 %v1087
      %v1089 = vpack.c.bf16 %v1088, %v1088
      %v1091 = vsel %vm1035, %v1089, 0
      %1093 = vmatprep.subr.bf16.mxu0 0
      %1094 = vmatpush1.bf16.msra.mxu0 %v1041
      %1095 = vmatprep.subr.bf16.mxu0 0
      %1096 = vmatpush1.bf16.msra.mxu0 0
      %1097 = vmatprep.subr.bf16.mxu0 0
      %1098 = vmatpush1.bf16.msra.mxu0 0
      %1099 = vmatprep.subr.bf16.mxu0 0
      %1100 = vmatpush1.bf16.msra.mxu0 0
      %1101 = vmatprep.subr.bf16.mxu0 0
      %1102 = vmatpush1.bf16.msra.mxu0 0
      %1103 = vmatprep.subr.bf16.mxu0 0
      %1104 = vmatpush1.bf16.msra.mxu0 0
      %1105 = vmatprep.subr.bf16.mxu0 0
      %1106 = vmatpush1.bf16.msra.mxu0 0
      %1107 = vmatprep.subr.bf16.mxu0 0
      %1108 = vmatpush1.bf16.msra.mxu0 0
      %1109 = vmatprep.subr.bf16.mxu0 0
      %1110 = vmatpush1.bf16.msra.mxu0 0
      %1111 = vmatprep.subr.bf16.mxu0 0
      %1112 = vmatpush1.bf16.msra.mxu0 0
      %1113 = vmatprep.subr.bf16.mxu0 0
      %1114 = vmatpush1.bf16.msra.mxu0 0
      %1115 = vmatprep.subr.bf16.mxu0 0
      %1116 = vmatpush1.bf16.msra.mxu0 0
      %1117 = vmatprep.subr.bf16.mxu0 0
      %1118 = vmatpush1.bf16.msra.mxu0 0
      %1119 = vmatprep.subr.bf16.mxu0 0
      %1120 = vmatpush1.bf16.msra.mxu0 0
      %1121 = vmatprep.subr.bf16.mxu0 0
      %1122 = vmatpush1.bf16.msra.mxu0 0
      %1123 = vmatprep.subr.bf16.mxu0 0
      %1124 = vmatpush1.bf16.msra.mxu0 0
      %1125 = vmatprep.mubr.bf16.mxu0 0
      %1126 = vmatmul.mubr.bf16.gmra.mrb[0].mxu0 %v1091
      %v1127 = vpop.f32.mrb[0].mxu0
      %v1128 = vadd.f32 0.0, %v1127
      %v1129 = vpop.f32.mrb[0].mxu0
      %v1130 = vpop.f32.mrb[0].mxu0
      %v1131 = vpop.f32.mrb[0].mxu0
      %1132 = vdwg.mxu0
      %1133 = vset.pattern.permute.xlu0 2
      %1134 = vperm.xlu0 %1133, %v1024
      %v1135 = vpop.permute.xlu0 %1134
      %vm1136 = vcmp.eq.s32.totalorder %v1027, %v1135
      %v1137 = vsel %vm1136, 1, 0
      %v1138 = vcvt.s32.f32 %v1137
      %v1139 = vpack.c.bf16 %v1138, %v1138
      %v1141 = vsel %vm1035, %v1139, 0
      %1143 = vmatprep.subr.bf16.mxu0 0
      %1144 = vmatpush1.bf16.msra.mxu0 %v1041
      %1145 = vmatprep.subr.bf16.mxu0 0
      %1146 = vmatpush1.bf16.msra.mxu0 0
      %1147 = vmatprep.subr.bf16.mxu0 0
      %1148 = vmatpush1.bf16.msra.mxu0 0
      %1149 = vmatprep.subr.bf16.mxu0 0
      %1150 = vmatpush1.bf16.msra.mxu0 0
      %1151 = vmatprep.subr.bf16.mxu0 0
      %1152 = vmatpush1.bf16.msra.mxu0 0
      %1153 = vmatprep.subr.bf16.mxu0 0
      %1154 = vmatpush1.bf16.msra.mxu0 0
      %1155 = vmatprep.subr.bf16.mxu0 0
      %1156 = vmatpush1.bf16.msra.mxu0 0
      %1157 = vmatprep.subr.bf16.mxu0 0
      %1158 = vmatpush1.bf16.msra.mxu0 0
      %1159 = vmatprep.subr.bf16.mxu0 0
      %1160 = vmatpush1.bf16.msra.mxu0 0
      %1161 = vmatprep.subr.bf16.mxu0 0
      %1162 = vmatpush1.bf16.msra.mxu0 0
      %1163 = vmatprep.subr.bf16.mxu0 0
      %1164 = vmatpush1.bf16.msra.mxu0 0
      %1165 = vmatprep.subr.bf16.mxu0 0
      %1166 = vmatpush1.bf16.msra.mxu0 0
      %1167 = vmatprep.subr.bf16.mxu0 0
      %1168 = vmatpush1.bf16.msra.mxu0 0
      %1169 = vmatprep.subr.bf16.mxu0 0
      %1170 = vmatpush1.bf16.msra.mxu0 0
      %1171 = vmatprep.subr.bf16.mxu0 0
      %1172 = vmatpush1.bf16.msra.mxu0 0
      %1173 = vmatprep.subr.bf16.mxu0 0
      %1174 = vmatpush1.bf16.msra.mxu0 0
      %1175 = vmatprep.mubr.bf16.mxu0 0
      %1176 = vmatmul.mubr.bf16.gmra.mrb[0].mxu0 %v1141
      %v1177 = vpop.f32.mrb[0].mxu0
      %v1178 = vadd.f32 0.0, %v1177
      %v1179 = vpop.f32.mrb[0].mxu0
      %v1180 = vpop.f32.mrb[0].mxu0
      %v1181 = vpop.f32.mrb[0].mxu0
      %1182 = vdwg.mxu0
      %1183 = vset.pattern.permute.xlu0 3
      %1184 = vperm.xlu0 %1183, %v1024
      %v1185 = vpop.permute.xlu0 %1184
      %vm1186 = vcmp.eq.s32.totalorder %v1027, %v1185
      %v1187 = vsel %vm1186, 1, 0
      %v1188 = vcvt.s32.f32 %v1187
      %v1189 = vpack.c.bf16 %v1188, %v1188
      %v1191 = vsel %vm1035, %v1189, 0
      %1193 = vmatprep.subr.bf16.mxu0 0
      %1194 = vmatpush1.bf16.msra.mxu0 %v1041
      %1195 = vmatprep.subr.bf16.mxu0 0
      %1196 = vmatpush1.bf16.msra.mxu0 0
      %1197 = vmatprep.subr.bf16.mxu0 0
      %1198 = vmatpush1.bf16.msra.mxu0 0
      %1199 = vmatprep.subr.bf16.mxu0 0
      %1200 = vmatpush1.bf16.msra.mxu0 0
      %1201 = vmatprep.subr.bf16.mxu0 0
      %1202 = vmatpush1.bf16.msra.mxu0 0
      %1203 = vmatprep.subr.bf16.mxu0 0
      %1204 = vmatpush1.bf16.msra.mxu0 0
      %1205 = vmatprep.subr.bf16.mxu0 0
      %1206 = vmatpush1.bf16.msra.mxu0 0
      %1207 = vmatprep.subr.bf16.mxu0 0
      %1208 = vmatpush1.bf16.msra.mxu0 0
      %1209 = vmatprep.subr.bf16.mxu0 0
      %1210 = vmatpush1.bf16.msra.mxu0 0
      %1211 = vmatprep.subr.bf16.mxu0 0
      %1212 = vmatpush1.bf16.msra.mxu0 0
      %1213 = vmatprep.subr.bf16.mxu0 0
      %1214 = vmatpush1.bf16.msra.mxu0 0
      %1215 = vmatprep.subr.bf16.mxu0 0
      %1216 = vmatpush1.bf16.msra.mxu0 0
      %1217 = vmatprep.subr.bf16.mxu0 0
      %1218 = vmatpush1.bf16.msra.mxu0 0
      %1219 = vmatprep.subr.bf16.mxu0 0
      %1220 = vmatpush1.bf16.msra.mxu0 0
      %1221 = vmatprep.subr.bf16.mxu0 0
      %1222 = vmatpush1.bf16.msra.mxu0 0
      %1223 = vmatprep.subr.bf16.mxu0 0
      %1224 = vmatpush1.bf16.msra.mxu0 0
      %1225 = vmatprep.mubr.bf16.mxu0 0
      %1226 = vmatmul.mubr.bf16.gmra.mrb[0].mxu0 %v1191
      %v1227 = vpop.f32.mrb[0].mxu0
      %v1228 = vadd.f32 0.0, %v1227
      %v1229 = vpop.f32.mrb[0].mxu0
      %v1230 = vpop.f32.mrb[0].mxu0
      %v1231 = vpop.f32.mrb[0].mxu0
      %1232 = vdwg.mxu0
      %1234 = vrot.lane.b32.xlu0 %v1128, 32
      %v1235 = vpop.permute.xlu0 %1234
      %1238 = vrot.lane.b32.xlu0 %v1178, 64
      %v1239 = vpop.permute.xlu0 %1238
      %1242 = vrot.lane.b32.xlu0 %v1228, 96
      %v1243 = vpop.permute.xlu0 %1242
      %vm1245 = vcmask 261120
      %v1246 = vsel %vm1245, %v1078, %v1235
      %vm1247 = vcmask 523264
      %v1248 = vsel %vm1247, %v1246, %v1239
      %v1249 = vsel %vm980, %v1248, %v1243
      %v1250 = vpack.c.bf16 %v1249, %v1249
      %v1251 = vpack.c.bf16 %v1019, %v1019
      %v1252 = vld [vmem:[%s11] sm:$0xf]
      %v1253 = vld [vmem:[%s11 + $0x4] sm:$0xf]
      %v1254 = vld [vmem:[%s11 + $0x8] sm:$0xf]
      %v1255 = vld [vmem:[%s11 + $0xc] sm:$0xf]
      %v1256 = vld [vmem:[%s11 + $0x10] sm:$0xf]
      %v1257 = vld [vmem:[%s11 + $0x14] sm:$0xf]
      %v1258 = vld [vmem:[%s11 + $0x18] sm:$0xf]
      %v1259 = vld [vmem:[%s11 + $0x1c] sm:$0xf]
      %v1260 = vld [vmem:[%s11 + $0x20] sm:$0xf]
      %v1261 = vld [vmem:[%s11 + $0x24] sm:$0xf]
      %v1262 = vld [vmem:[%s11 + $0x28] sm:$0xf]
      %v1263 = vld [vmem:[%s11 + $0x2c] sm:$0xf]
      %v1264 = vld [vmem:[%s11 + $0x30] sm:$0xf]
      %v1265 = vld [vmem:[%s11 + $0x34] sm:$0xf]
      %v1266 = vld [vmem:[%s11 + $0x38] sm:$0xf]
      %v1267 = vld [vmem:[%s11 + $0x3c] sm:$0xf]
      %v1268 = vld [vmem:[%s11 + $0x40] sm:$0xf]
      %v1269 = vld [vmem:[%s11 + $0x44] sm:$0xf]
      %v1270 = vld [vmem:[%s11 + $0x48] sm:$0xf]
      %v1271 = vld [vmem:[%s11 + $0x4c] sm:$0xf]
      %v1272 = vld [vmem:[%s11 + $0x50] sm:$0xf]
      %v1273 = vld [vmem:[%s11 + $0x54] sm:$0xf]
      %v1274 = vld [vmem:[%s11 + $0x58] sm:$0xf]
      %v1275 = vld [vmem:[%s11 + $0x5c] sm:$0xf]
      %v1276 = vld [vmem:[%s11 + $0x60] sm:$0xf]
      %v1277 = vld [vmem:[%s11 + $0x64] sm:$0xf]
      %v1278 = vld [vmem:[%s11 + $0x68] sm:$0xf]
      %v1279 = vld [vmem:[%s11 + $0x6c] sm:$0xf]
      %v1280 = vld [vmem:[%s12] sm:$0x1]
      %v1282 = vlaneseq
      %v1283 = vshrl.u32 %v1282, 7
      %v1284 = vsub.s32 0, %v1283
      %v1285 = vrot.slane %v1280, %v1284
      %v1315 = vunpack.c.l.b16 %v1252
      %v1316 = vunpack.c.l.b16 %v1253
      %v1317 = vunpack.c.l.b16 %v1254
      %v1318 = vunpack.c.l.b16 %v1255
      %v1319 = vunpack.c.l.b16 %v1256
      %v1320 = vunpack.c.l.b16 %v1257
      %v1321 = vunpack.c.l.b16 %v1258
      %v1322 = vunpack.c.l.b16 %v1259
      %v1323 = vunpack.c.l.b16 %v1260
      %v1324 = vunpack.c.l.b16 %v1261
      %v1325 = vunpack.c.l.b16 %v1262
      %v1326 = vunpack.c.l.b16 %v1263
      %v1327 = vunpack.c.l.b16 %v1264
      %v1328 = vunpack.c.l.b16 %v1265
      %v1329 = vunpack.c.l.b16 %v1266
      %v1330 = vunpack.c.l.b16 %v1267
      %v1331 = vunpack.c.l.b16 %v1268
      %v1332 = vunpack.c.l.b16 %v1269
      %v1333 = vunpack.c.l.b16 %v1270
      %v1334 = vunpack.c.l.b16 %v1271
      %v1335 = vunpack.c.l.b16 %v1272
      %v1336 = vunpack.c.l.b16 %v1273
      %v1337 = vunpack.c.l.b16 %v1274
      %v1338 = vunpack.c.l.b16 %v1275
      %v1339 = vunpack.c.l.b16 %v1276
      %v1340 = vunpack.c.l.b16 %v1277
      %v1341 = vunpack.c.l.b16 %v1278
      %v1342 = vunpack.c.l.b16 %v1279
      %v1343 = vpack.c.b16 %v1316, %v1315
      %v1344 = vpack.c.b16 %v1318, %v1317
      %v1345 = vpack.c.b16 %v1320, %v1319
      %v1346 = vpack.c.b16 %v1322, %v1321
      %v1347 = vpack.c.b16 %v1324, %v1323
      %v1348 = vpack.c.b16 %v1326, %v1325
      %v1349 = vpack.c.b16 %v1328, %v1327
      %v1350 = vpack.c.b16 %v1330, %v1329
      %v1351 = vpack.c.b16 %v1332, %v1331
      %v1352 = vpack.c.b16 %v1334, %v1333
      %v1353 = vpack.c.b16 %v1336, %v1335
      %v1354 = vpack.c.b16 %v1338, %v1337
      %v1355 = vpack.c.b16 %v1340, %v1339
      %v1356 = vpack.c.b16 %v1342, %v1341
      %v1372 = vsel %vm980, %v1251, 0
      %1374 = vmatprep.subr.bf16.mxu0 0
      %1375 = vmatpush1.bf16.msra.mxu0 %v1343
      %1376 = vmatprep.subr.bf16.mxu0 0
      %1377 = vmatpush1.bf16.msra.mxu0 %v1344
      %1378 = vmatprep.subr.bf16.mxu0 0
      %1379 = vmatpush1.bf16.msra.mxu0 %v1345
      %1380 = vmatprep.subr.bf16.mxu0 0
      %1381 = vmatpush1.bf16.msra.mxu0 %v1346
      %1382 = vmatprep.subr.bf16.mxu0 0
      %1383 = vmatpush1.bf16.msra.mxu0 %v1347
      %1384 = vmatprep.subr.bf16.mxu0 0
      %1385 = vmatpush1.bf16.msra.mxu0 %v1348
      %1386 = vmatprep.subr.bf16.mxu0 0
      %1387 = vmatpush1.bf16.msra.mxu0 %v1349
      %1388 = vmatprep.subr.bf16.mxu0 0
      %1389 = vmatpush1.bf16.msra.mxu0 %v1350
      %1390 = vmatprep.subr.bf16.mxu0 0
      %1391 = vmatpush1.bf16.msra.mxu0 %v1351
      %1392 = vmatprep.subr.bf16.mxu0 0
      %1393 = vmatpush1.bf16.msra.mxu0 %v1352
      %1394 = vmatprep.subr.bf16.mxu0 0
      %1395 = vmatpush1.bf16.msra.mxu0 %v1353
      %1396 = vmatprep.subr.bf16.mxu0 0
      %1397 = vmatpush1.bf16.msra.mxu0 %v1354
      %1398 = vmatprep.subr.bf16.mxu0 0
      %1399 = vmatpush1.bf16.msra.mxu0 %v1355
      %1400 = vmatprep.subr.bf16.mxu0 0
      %1401 = vmatpush1.bf16.msra.mxu0 %v1356
      %1402 = vmatprep.subr.bf16.mxu0 0
      %1403 = vmatpush1.bf16.msra.mxu0 0
      %1404 = vmatprep.subr.bf16.mxu0 0
      %1405 = vmatpush1.bf16.msra.mxu0 0
      %1406 = vmatprep.mubr.bf16.mxu0 %v1372
      %1407 = vmatmul.mubr.bf16.gmra.mrb[0].mxu0 %v1250
      %v1408 = vpop.f32.mrb[0].mxu0
      %v1409 = vadd.f32 %v1285, %v1408
      %v1410 = vpop.f32.mrb[0].mxu0
      %v1411 = vpop.f32.mrb[0].mxu0
      %v1412 = vpop.f32.mrb[0].mxu0
      %1413 = vdwg.mxu0
      %v1414 = vmax.f32 %v1409, 0.0
      %v1415 = vpack.c.bf16 %v1414, %v1414
      %v1416 = vld [vmem:[%s13] sm:$0xf]
      %v1417 = vld [vmem:[%s13 + $0x4] sm:$0xf]
      %v1418 = vld [vmem:[%s13 + $0x8] sm:$0xf]
      %v1419 = vld [vmem:[%s13 + $0xc] sm:$0xf]
      %v1420 = vld [vmem:[%s13 + $0x10] sm:$0xf]
      %v1421 = vld [vmem:[%s13 + $0x14] sm:$0xf]
      %v1422 = vld [vmem:[%s13 + $0x18] sm:$0xf]
      %v1423 = vld [vmem:[%s13 + $0x1c] sm:$0xf]
      %v1424 = vld [vmem:[%s13 + $0x20] sm:$0xf]
      %v1425 = vld [vmem:[%s13 + $0x24] sm:$0xf]
      %v1426 = vld [vmem:[%s13 + $0x28] sm:$0xf]
      %v1427 = vld [vmem:[%s13 + $0x2c] sm:$0xf]
      %v1428 = vld [vmem:[%s13 + $0x30] sm:$0xf]
      %v1429 = vld [vmem:[%s13 + $0x34] sm:$0xf]
      %v1430 = vld [vmem:[%s13 + $0x38] sm:$0xf]
      %v1431 = vld [vmem:[%s13 + $0x3c] sm:$0xf]
      %v1432 = vld [vmem:[%s14] sm:$0x1]
      %v1434 = vlaneseq
      %v1435 = vshrl.u32 %v1434, 7
      %v1436 = vsub.s32 0, %v1435
      %v1437 = vrot.slane %v1432, %v1436
      %v1455 = vunpack.c.l.b16 %v1416
      %v1456 = vunpack.c.l.b16 %v1417
      %v1457 = vunpack.c.l.b16 %v1418
      %v1458 = vunpack.c.l.b16 %v1419
      %v1459 = vunpack.c.l.b16 %v1420
      %v1460 = vunpack.c.l.b16 %v1421
      %v1461 = vunpack.c.l.b16 %v1422
      %v1462 = vunpack.c.l.b16 %v1423
      %v1463 = vunpack.c.l.b16 %v1424
      %v1464 = vunpack.c.l.b16 %v1425
      %v1465 = vunpack.c.l.b16 %v1426
      %v1466 = vunpack.c.l.b16 %v1427
      %v1467 = vunpack.c.l.b16 %v1428
      %v1468 = vunpack.c.l.b16 %v1429
      %v1469 = vunpack.c.l.b16 %v1430
      %v1470 = vunpack.c.l.b16 %v1431
      %v1471 = vpack.c.b16 %v1456, %v1455
      %v1472 = vpack.c.b16 %v1458, %v1457
      %v1473 = vpack.c.b16 %v1460, %v1459
      %v1474 = vpack.c.b16 %v1462, %v1461
      %v1475 = vpack.c.b16 %v1464, %v1463
      %v1476 = vpack.c.b16 %v1466, %v1465
      %v1477 = vpack.c.b16 %v1468, %v1467
      %v1478 = vpack.c.b16 %v1470, %v1469
      %1487 = vmatprep.subr.bf16.mxu0 0
      %1488 = vmatpush1.bf16.msra.mxu0 %v1471
      %1489 = vmatprep.subr.bf16.mxu0 0
      %1490 = vmatpush1.bf16.msra.mxu0 %v1472
      %1491 = vmatprep.subr.bf16.mxu0 0
      %1492 = vmatpush1.bf16.msra.mxu0 %v1473
      %1493 = vmatprep.subr.bf16.mxu0 0
      %1494 = vmatpush1.bf16.msra.mxu0 %v1474
      %1495 = vmatprep.subr.bf16.mxu0 0
      %1496 = vmatpush1.bf16.msra.mxu0 %v1475
      %1497 = vmatprep.subr.bf16.mxu0 0
      %1498 = vmatpush1.bf16.msra.mxu0 %v1476
      %1499 = vmatprep.subr.bf16.mxu0 0
      %1500 = vmatpush1.bf16.msra.mxu0 %v1477
      %1501 = vmatprep.subr.bf16.mxu0 0
      %1502 = vmatpush1.bf16.msra.mxu0 %v1478
      %1503 = vmatprep.subr.bf16.mxu0 0
      %1504 = vmatpush1.bf16.msra.mxu0 0
      %1505 = vmatprep.subr.bf16.mxu0 0
      %1506 = vmatpush1.bf16.msra.mxu0 0
      %1507 = vmatprep.subr.bf16.mxu0 0
      %1508 = vmatpush1.bf16.msra.mxu0 0
      %1509 = vmatprep.subr.bf16.mxu0 0
      %1510 = vmatpush1.bf16.msra.mxu0 0
      %1511 = vmatprep.subr.bf16.mxu0 0
      %1512 = vmatpush1.bf16.msra.mxu0 0
      %1513 = vmatprep.subr.bf16.mxu0 0
      %1514 = vmatpush1.bf16.msra.mxu0 0
      %1515 = vmatprep.subr.bf16.mxu0 0
      %1516 = vmatpush1.bf16.msra.mxu0 0
      %1517 = vmatprep.subr.bf16.mxu0 0
      %1518 = vmatpush1.bf16.msra.mxu0 0
      %1519 = vmatprep.mubr.bf16.mxu0 0
      %1520 = vmatmul.mubr.bf16.gmra.mrb[0].mxu0 %v1415
      %v1521 = vpop.f32.mrb[0].mxu0
      %v1522 = vadd.f32 %v1437, %v1521
      %v1523 = vpop.f32.mrb[0].mxu0
      %v1524 = vpop.f32.mrb[0].mxu0
      %v1525 = vpop.f32.mrb[0].mxu0
      %1526 = vdwg.mxu0
      %v1527 = vmax.f32 %v1522, 0.0
      %v1528 = vpack.c.bf16 %v1527, %v1527
      %v1529 = vld [vmem:[%s15] sm:$0xf]
      %v1530 = vld [vmem:[%s15 + $0x4] sm:$0xf]
      %v1531 = vld [vmem:[%s15 + $0x8] sm:$0xf]
      %v1532 = vld [vmem:[%s15 + $0xc] sm:$0xf]
      %v1533 = vld [vmem:[%s15 + $0x10] sm:$0xf]
      %v1534 = vld [vmem:[%s15 + $0x14] sm:$0xf]
      %v1535 = vld [vmem:[%s15 + $0x18] sm:$0xf]
      %v1536 = vld [vmem:[%s15 + $0x1c] sm:$0xf]
      %v1537 = vld [vmem:[%s16] sm:$0x1]
      %v1539 = vlaneseq
      %v1540 = vshrl.u32 %v1539, 7
      %v1541 = vsub.s32 0, %v1540
      %v1542 = vrot.slane %v1537, %v1541
      %v1552 = vunpack.c.l.b16 %v1529
      %v1553 = vunpack.c.l.b16 %v1530
      %v1554 = vunpack.c.l.b16 %v1531
      %v1555 = vunpack.c.l.b16 %v1532
      %v1556 = vunpack.c.l.b16 %v1533
      %v1557 = vunpack.c.l.b16 %v1534
      %v1558 = vunpack.c.l.b16 %v1535
      %v1559 = vunpack.c.l.b16 %v1536
      %v1560 = vpack.c.b16 %v1553, %v1552
      %v1561 = vpack.c.b16 %v1555, %v1554
      %v1562 = vpack.c.b16 %v1557, %v1556
      %v1563 = vpack.c.b16 %v1559, %v1558
      %v1569 = vsel %vm1247, %v1528, 0
      %1571 = vmatprep.subr.bf16.mxu0 0
      %1572 = vmatpush1.bf16.msra.mxu0 %v1560
      %1573 = vmatprep.subr.bf16.mxu0 0
      %1574 = vmatpush1.bf16.msra.mxu0 %v1561
      %1575 = vmatprep.subr.bf16.mxu0 0
      %1576 = vmatpush1.bf16.msra.mxu0 %v1562
      %1577 = vmatprep.subr.bf16.mxu0 0
      %1578 = vmatpush1.bf16.msra.mxu0 %v1563
      %1579 = vmatprep.subr.bf16.mxu0 0
      %1580 = vmatpush1.bf16.msra.mxu0 0
      %1581 = vmatprep.subr.bf16.mxu0 0
      %1582 = vmatpush1.bf16.msra.mxu0 0
      %1583 = vmatprep.subr.bf16.mxu0 0
      %1584 = vmatpush1.bf16.msra.mxu0 0
      %1585 = vmatprep.subr.bf16.mxu0 0
      %1586 = vmatpush1.bf16.msra.mxu0 0
      %1587 = vmatprep.subr.bf16.mxu0 0
      %1588 = vmatpush1.bf16.msra.mxu0 0
      %1589 = vmatprep.subr.bf16.mxu0 0
      %1590 = vmatpush1.bf16.msra.mxu0 0
      %1591 = vmatprep.subr.bf16.mxu0 0
      %1592 = vmatpush1.bf16.msra.mxu0 0
      %1593 = vmatprep.subr.bf16.mxu0 0
      %1594 = vmatpush1.bf16.msra.mxu0 0
      %1595 = vmatprep.subr.bf16.mxu0 0
      %1596 = vmatpush1.bf16.msra.mxu0 0
      %1597 = vmatprep.subr.bf16.mxu0 0
      %1598 = vmatpush1.bf16.msra.mxu0 0
      %1599 = vmatprep.subr.bf16.mxu0 0
      %1600 = vmatpush1.bf16.msra.mxu0 0
      %1601 = vmatprep.subr.bf16.mxu0 0
      %1602 = vmatpush1.bf16.msra.mxu0 0
      %1603 = vmatprep.mubr.bf16.mxu0 0
      %1604 = vmatmul.mubr.bf16.gmra.mrb[0].mxu0 %v1569
      %v1605 = vpop.f32.mrb[0].mxu0
      %v1606 = vadd.f32 %v1542, %v1605
      %v1607 = vpop.f32.mrb[0].mxu0
      %v1608 = vpop.f32.mrb[0].mxu0
      %v1609 = vpop.f32.mrb[0].mxu0
      %1610 = vdwg.mxu0
      %v1611 = vlaneseq
      %v1612 = vshrl.u32 %v1611, 7
      %v1613 = vld [vmem:[%s615] sm:$0x1]
      %v1614 = vlaneseq
      %v1615 = vshrl.u32 %v1614, 7
      %v1616 = vsub.s32 0, %v1615
      %v1617 = vrot.slane %v1613, %v1616
      %vm1618 = vcmp.eq.s32.totalorder %v1612, %v1617
      %v1619 = vsel %vm1618, 1, 0
      %v1620 = vcvt.s32.f32 %v1619
      %v1621 = vpack.c.bf16 %v1620, %v1620
      %v1622 = vld [vmem:[%s619] sm:$0xff]
      %v1623 = vpack.c.bf16 %v1606, %v1606
      %v1625 = vsel %vm1035, %v1621, 0
      %v1628 = vsel %vm1039, %v1623, 0
      %1630 = vmatprep.subr.bf16.mxu0 0
      %1631 = vmatpush1.bf16.msra.mxu0 %v1628
      %1632 = vmatprep.subr.bf16.mxu0 0
      %1633 = vmatpush1.bf16.msra.mxu0 0
      %1634 = vmatprep.subr.bf16.mxu0 0
      %1635 = vmatpush1.bf16.msra.mxu0 0
      %1636 = vmatprep.subr.bf16.mxu0 0
      %1637 = vmatpush1.bf16.msra.mxu0 0
      %1638 = vmatprep.subr.bf16.mxu0 0
      %1639 = vmatpush1.bf16.msra.mxu0 0
      %1640 = vmatprep.subr.bf16.mxu0 0
      %1641 = vmatpush1.bf16.msra.mxu0 0
      %1642 = vmatprep.subr.bf16.mxu0 0
      %1643 = vmatpush1.bf16.msra.mxu0 0
      %1644 = vmatprep.subr.bf16.mxu0 0
      %1645 = vmatpush1.bf16.msra.mxu0 0
      %1646 = vmatprep.subr.bf16.mxu0 0
      %1647 = vmatpush1.bf16.msra.mxu0 0
      %1648 = vmatprep.subr.bf16.mxu0 0
      %1649 = vmatpush1.bf16.msra.mxu0 0
      %1650 = vmatprep.subr.bf16.mxu0 0
      %1651 = vmatpush1.bf16.msra.mxu0 0
      %1652 = vmatprep.subr.bf16.mxu0 0
      %1653 = vmatpush1.bf16.msra.mxu0 0
      %1654 = vmatprep.subr.bf16.mxu0 0
      %1655 = vmatpush1.bf16.msra.mxu0 0
      %1656 = vmatprep.subr.bf16.mxu0 0
      %1657 = vmatpush1.bf16.msra.mxu0 0
      %1658 = vmatprep.subr.bf16.mxu0 0
      %1659 = vmatpush1.bf16.msra.mxu0 0
      %1660 = vmatprep.subr.bf16.mxu0 0
      %1661 = vmatpush1.bf16.msra.mxu0 0
      %1662 = vmatprep.mubr.bf16.mxu0 0
      %1663 = vmatmul.mubr.bf16.gmra.mrb[0].mxu0 %v1625
      %v1664 = vpop.f32.mrb[0].mxu0
      %v1665 = vadd.f32 0.0, %v1664
      %v1666 = vpop.f32.mrb[0].mxu0
      %v1667 = vpop.f32.mrb[0].mxu0
      %v1668 = vpop.f32.mrb[0].mxu0
      %1669 = vdwg.mxu0
      %v1670 = vadd.f32 %v1622, %v1665
      %1671 = vst.msk [vmem:[%s619] sm:$0xff] %vm1245, %v1670
      %p1672 = scmp.lt.s32.totalorder %s32, 1
      %s1673 = scalar_select %p1672, %s32, 1
      %s1674 = smul.addr %s1673, 8
      %s1675 = scalar_lea.vmem %s17, %s1674
      // Predicated region
      $region93: #{gtmp_forward.6} parent=87 // pred_check
        %p1676 = pneg %p436
      $region94: #{gtmp_forward.6} parent=87 // pred_check_branch
        %1678 = sbr.rel (%p1676) target = $region96
      $region95: #{gtmp_forward.6} parent=87 // pred_region
        _
      $region96: #{gtmp_forward.6} parent=87 // pred_fallthru
        _
    $region88: #{gtmp_forward.6} parent=5 // pred_fallthru
      _
    %p1679 = scmp.le.s32.totalorder 2, %s23
    // Predicated region
    $region97: #{gtmp_forward.6} parent=5 // pred_check
      %p1680 = pneg %p1679
    $region98: #{gtmp_forward.6} parent=5 // pred_check_branch
      %1682 = sbr.rel (%p1680) target = $region100
    $region99: #{gtmp_forward.6} parent=5 // pred_region
      %s1683 = ssub.s32 %s23, 2
      // Predicated region
      $region101: #{gtmp_forward.6} parent=99 // pred_check
        %p1684 = pneg %p442
      $region102: #{gtmp_forward.6} parent=99 // pred_check_branch
        %1686 = sbr.rel (%p1684) target = $region104
      $region103: #{gtmp_forward.6} parent=99 // pred_region
        %p1687 = scmp.lt.s32.totalorder %s34, 1
        %s1688 = scalar_select %p1687, %s34, 1
        %s1689 = smul.addr %s1688, 8
        %s1690 = scalar_lea.vmem %s17, %s1689
      $region104: #{gtmp_forward.6} parent=99 // pred_fallthru
        _
    $region100: #{gtmp_forward.6} parent=5 // pred_fallthru
      _
  $region6: #{gtmp_forward.6} parent=0 // loop_footer
    %s27 = sadd.s32 1, %s23
  $region7: #{gtmp_forward.6} parent=0 // loop_footer_branch
    %22 = sbr.rel target = $region3
  $region8: #{gtmp_forward.6} parent=0 // loop_exit
    _

</llo_original>
